<compile_context>
chip_gen: v7x
topology: tpu7x:2x2x1
jax: 0.10.0
libtpu: 0.0.40
codegen_flags: <defaults>
</compile_context>

<pallas_src>
import functools

import jax
import jax.numpy as jnp
from jax.experimental import pallas as pl
from jax.experimental.pallas import tpu as pltpu

LANE = 128
SUBLANE = 8


def _round_up(n, m):
    return ((n + m - 1) // m) * m


def encoder_fused_kernel(
    x_ref, h0_ref,
    w_i_ref, w_h_ref, b_i_ref, b_hn_ref,
    w_fc_ref, b_fc_ref,
    out_ref, h_out_ref,
    gi_sc, hall_sc,
    *, seq_len,
):
    """Single-invocation fused GRU(T steps) + ReLU + Linear.

    x_ref:   (Tp, Din)   bf16   all timesteps (rows >= seq_len are zero padding)
    h0_ref:  (1, Hp)     f32    initial hidden (lane-padded)
    w_i_ref: (Din, 3*Hp) bf16   [W_ir | W_iz | W_in]
    w_h_ref: (Hp, 3*Hp)  bf16   [W_hr | W_hz | W_hn]
    b_i_ref: (1, 3*Hp)   f32    [b_ir+b_hr | b_iz+b_hz | b_in]
    b_hn_ref:(1, Hp)     f32
    w_fc_ref:(Hp, Dp)    bf16
    b_fc_ref:(1, Dp)     f32
    out_ref: (Tp, Dp)    f32    fc(relu(h_t)) for every step (dense slab)
    h_out_ref:(1, Hp)    f32    final hidden state
    gi_sc:   (Tp, 3*Hp)  f32    scratch: batched input-gate pre-activations
    hall_sc: (Tp, Hp)    f32    scratch: per-step hidden states
    """
    Hp = h0_ref.shape[-1]

    # --- Prologue: one batched MXU push for the input projection of ALL timesteps. ---
    gi_sc[...] = (
        jnp.dot(x_ref[...], w_i_ref[...], preferred_element_type=jnp.float32)
        + b_i_ref[...]
    )
    # Zero-init so padded rows (seq_len..Tp-1) give deterministic (sliced-off) fc outputs.
    hall_sc[...] = jnp.zeros_like(hall_sc)

    # --- Sequential GRU recurrence (only the h @ W_h matmul is inherently M=1). ---
    def step(t, h):
        g_i = gi_sc[pl.ds(t, 1), :]                                   # (1, 3*Hp)
        g_h = jnp.dot(h.astype(jnp.bfloat16), w_h_ref[...],
                      preferred_element_type=jnp.float32)             # (1, 3*Hp)
        # PyTorch GRU cell (gate order r, z, n — matches torch.nn.GRU):
        #   r = sigmoid(W_ir x + b_ir + W_hr h + b_hr)
        #   z = sigmoid(W_iz x + b_iz + W_hz h + b_hz)
        #   n = tanh(W_in x + b_in + r * (W_hn h + b_hn))
        #   h' = (1 - z) * n + z * h
        r = jax.nn.sigmoid(g_i[:, :Hp] + g_h[:, :Hp])
        z = jax.nn.sigmoid(g_i[:, Hp:2 * Hp] + g_h[:, Hp:2 * Hp])
        n = jnp.tanh(g_i[:, 2 * Hp:] + r * (g_h[:, 2 * Hp:] + b_hn_ref[...]))
        h_new = (1.0 - z) * n + z * h
        hall_sc[pl.ds(t, 1), :] = h_new
        return h_new

    h_final = jax.lax.fori_loop(0, seq_len, step, h0_ref[...], unroll=True)

    # --- Epilogue: batched fc head, one MXU push, sublane+lane-dense output store. ---
    relu_h = jnp.maximum(hall_sc[...], 0.0)
    out_ref[...] = (
        jnp.dot(relu_h.astype(jnp.bfloat16), w_fc_ref[...],
                preferred_element_type=jnp.float32)
        + b_fc_ref[...]
    )
    h_out_ref[...] = h_final


def encoder_forward(input_vector, hidden_vector, params, dim_input, dim_hidden, dim_output):
    """Mirrors EncoderModel.forward over a (1, T, dim_input) batch-first sequence.

    With T == 1 this is exactly the PyTorch forward() (single GRU step applied to the
    (1, 1, dim_input).float() view).  Returns (output_vector (1, T, dim_output),
    hidden_vector (1, 1, dim_hidden)).
    """
    Din = params["w_i"].shape[0]
    Hp = params["w_h"].shape[0]
    Dp = params["w_fc"].shape[1]
    assert Din == dim_input

    x = jnp.reshape(input_vector, (-1, dim_input)).astype(jnp.float32)       # (T, Din)
    T = x.shape[0]
    Tp = _round_up(T, SUBLANE)
    x = jnp.pad(x, ((0, Tp - T), (0, 0))).astype(jnp.bfloat16)               # (Tp, Din) bf16
    h0 = jnp.reshape(hidden_vector, (1, dim_hidden)).astype(jnp.float32)
    h0 = jnp.pad(h0, ((0, 0), (0, Hp - dim_hidden)))                         # (1, Hp)

    const = lambda i: (0, 0)

    out, h_out = pl.pallas_call(
        functools.partial(encoder_fused_kernel, seq_len=T),
        out_shape=(
            jax.ShapeDtypeStruct((Tp, Dp), jnp.float32),
            jax.ShapeDtypeStruct((1, Hp), jnp.float32),
        ),
        grid_spec=pltpu.PrefetchScalarGridSpec(
            num_scalar_prefetch=0,
            grid=(1,),
            in_specs=[
                pl.BlockSpec((Tp, Din), const),       # x: all timesteps, one DMA
                pl.BlockSpec((1, Hp), const),         # h0
                pl.BlockSpec((Din, 3 * Hp), const),   # W_i
                pl.BlockSpec((Hp, 3 * Hp), const),    # W_h
                pl.BlockSpec((1, 3 * Hp), const),     # b_i
                pl.BlockSpec((1, Hp), const),         # b_hn
                pl.BlockSpec((Hp, Dp), const),        # W_fc
                pl.BlockSpec((1, Dp), const),         # b_fc
            ],
            out_specs=(
                pl.BlockSpec((Tp, Dp), const),        # dense per-step fc output slab
                pl.BlockSpec((1, Hp), const),         # final hidden
            ),
            scratch_shapes=[
                pltpu.VMEM((Tp, 3 * Hp), jnp.float32),   # batched gate pre-activations
                pltpu.VMEM((Tp, Hp), jnp.float32),       # per-step hidden states
            ],
        ),
        compiler_params=pltpu.CompilerParams(
            dimension_semantics=("arbitrary",),
        ),
    )(
        x, h0,
        params["w_i"], params["w_h"], params["b_i"], params["b_hn"],
        params["w_fc"], params["b_fc"],
    )

    output_vector = jnp.reshape(out[:T, :dim_output], (1, T, dim_output))
    hidden_out = jnp.reshape(h_out[:, :dim_hidden], (1, 1, dim_hidden))
    return output_vector, hidden_out


def init_params(key, dim_input, dim_hidden, dim_output):
    """PyTorch-style uniform(-1/sqrt(H), 1/sqrt(H)) init, then fused/padded for the kernel.

    Gate order along the fused 3*Hp axis is (r, z, n) — the order torch.nn.GRU uses for
    weight_ih_l0 / weight_hh_l0 (stored transposed here: (in_features, out_features)).
    NOTE: all padding MUST be zero — zero-padded bias/weight lanes keep the padded hidden
    lanes identically zero through the recurrence (inertness invariant).
    """
    ks = jax.random.split(key, 14)
    bound = 1.0 / jnp.sqrt(jnp.float32(dim_hidden))

    def u(k, shape):
        return jax.random.uniform(k, shape, jnp.float32, -bound, bound)

    w_ir, w_iz, w_in = (u(ks[i], (dim_input, dim_hidden)) for i in range(0, 3))
    w_hr, w_hz, w_hn = (u(ks[i], (dim_hidden, dim_hidden)) for i in range(3, 6))
    b_ir, b_iz, b_in = (u(ks[i], (1, dim_hidden)) for i in range(6, 9))
    b_hr, b_hz, b_hn = (u(ks[i], (1, dim_hidden)) for i in range(9, 12))
    w_fc = u(ks[12], (dim_hidden, dim_output))
    b_fc = u(ks[13], (1, dim_output))

    Hp = _round_up(dim_hidden, LANE)
    Dp = _round_up(dim_output, LANE)

    def pad_cols(a, cols):
        return jnp.pad(a, ((0, 0), (0, cols - a.shape[1])))

    def pad_rc(a, rows, cols):
        return jnp.pad(a, ((0, rows - a.shape[0]), (0, cols - a.shape[1])))

    w_i = jnp.concatenate([pad_cols(w_ir, Hp), pad_cols(w_iz, Hp), pad_cols(w_in, Hp)], axis=1)
    w_h = jnp.concatenate([pad_rc(w_hr, Hp, Hp), pad_rc(w_hz, Hp, Hp), pad_rc(w_hn, Hp, Hp)],
                          axis=1)
    # Pre-summed r/z biases; b_in rides along in b_i, b_hn stays separate (needed inside
    # the r * (W_hn h + b_hn) term).
    b_i = jnp.concatenate([pad_cols(b_ir + b_hr, Hp),
                           pad_cols(b_iz + b_hz, Hp),
                           pad_cols(b_in, Hp)], axis=1)

    return {
        "w_i": w_i.astype(jnp.bfloat16),                    # (Din, 3*Hp)
        "w_h": w_h.astype(jnp.bfloat16),                    # (Hp, 3*Hp)
        "b_i": b_i,                                         # (1, 3*Hp) f32
        "b_hn": pad_cols(b_hn, Hp),                         # (1, Hp)   f32
        "w_fc": pad_rc(w_fc, Hp, Dp).astype(jnp.bfloat16),  # (Hp, Dp)
        "b_fc": pad_cols(b_fc, Dp),                         # (1, Dp)   f32
    }


def encoder_reference(input_vector, hidden_vector, params, dim_input, dim_hidden, dim_output):
    """Pure-JAX reference using the same fused/bf16 params (correctness check)."""
    Hp = params["w_h"].shape[0]
    w_i, w_h = params["w_i"], params["w_h"]
    b_i, b_hn = params["b_i"], params["b_hn"]
    w_fc, b_fc = params["w_fc"], params["b_fc"]

    x = jnp.reshape(input_vector, (-1, dim_input)).astype(jnp.float32)
    T = x.shape[0]
    h = jnp.pad(jnp.reshape(hidden_vector, (1, dim_hidden)).astype(jnp.float32),
                ((0, 0), (0, Hp - dim_hidden)))
    outs = []
    for t in range(T):
        xt = x[t:t + 1]
        g_i = jnp.dot(xt.astype(jnp.bfloat16), w_i, preferred_element_type=jnp.float32) + b_i
        g_h = jnp.dot(h.astype(jnp.bfloat16), w_h, preferred_element_type=jnp.float32)
        r = jax.nn.sigmoid(g_i[:, :Hp] + g_h[:, :Hp])
        z = jax.nn.sigmoid(g_i[:, Hp:2 * Hp] + g_h[:, Hp:2 * Hp])
        n = jnp.tanh(g_i[:, 2 * Hp:] + r * (g_h[:, 2 * Hp:] + b_hn))
        h = (1.0 - z) * n + z * h
        o = jnp.dot(jnp.maximum(h, 0.0).astype(jnp.bfloat16), w_fc,
                    preferred_element_type=jnp.float32) + b_fc
        outs.append(o[:, :dim_output])
    out = jnp.reshape(jnp.stack(outs, axis=0), (1, T, dim_output))
    return out, jnp.reshape(h[:, :dim_hidden], (1, 1, dim_hidden))


if __name__ == "__main__":
    dim_input, dim_hidden, dim_output = 32, 32, 32
    seq_len = 8   # seq_len == 1 reproduces EncoderModel.forward() exactly (one GRU step)

    key = jax.random.PRNGKey(0)
    k_params, k_x = jax.random.split(key)

    params = init_params(k_params, dim_input, dim_hidden, dim_output)

    # batch_first sequence; each step is the module's (1, 1, dim_input).float() view.
    input_vector = jax.random.normal(k_x, (1, seq_len, dim_input), jnp.float32)
    # initialize_hidden(): zeros of shape (1, 1, dim_hidden)
    hidden_vector = jnp.zeros((1, 1, dim_hidden), jnp.float32)

    output_vector, hidden_out = encoder_forward(
        input_vector, hidden_vector, params, dim_input, dim_hidden, dim_output)
    jax.block_until_ready((output_vector, hidden_out))

    assert output_vector.shape == (1, seq_len, dim_output)
    assert hidden_out.shape == (1, 1, dim_hidden)

    ref_out, ref_h = encoder_reference(
        input_vector, hidden_vector, params, dim_input, dim_hidden, dim_output)
    assert jnp.allclose(output_vector, ref_out, atol=1e-2, rtol=1e-2)
    assert jnp.allclose(hidden_out, ref_h, atol=1e-2, rtol=1e-2)

    print("KERNEL_OK")
</pallas_src>

<mosaic_0001>
module attributes {stable_mosaic.version = 11 : i64} {
  func.func @encoder_fused_kernel(%arg0: i32, %arg1: memref<8x32xbf16, #tpu.memory_space<vmem>>, %arg2: memref<1x128xf32, #tpu.memory_space<vmem>>, %arg3: memref<32x384xbf16, #tpu.memory_space<vmem>>, %arg4: memref<128x384xbf16, #tpu.memory_space<vmem>>, %arg5: memref<1x384xf32, #tpu.memory_space<vmem>>, %arg6: memref<1x128xf32, #tpu.memory_space<vmem>>, %arg7: memref<128x128xbf16, #tpu.memory_space<vmem>>, %arg8: memref<1x128xf32, #tpu.memory_space<vmem>>, %arg9: memref<8x128xf32, #tpu.memory_space<vmem>>, %arg10: memref<1x128xf32, #tpu.memory_space<vmem>>, %arg11: memref<8x384xf32, #tpu.memory_space<vmem>>, %arg12: memref<8x128xf32, #tpu.memory_space<vmem>>) attributes {dimension_semantics = [#tpu.dimension_semantics<arbitrary>], iteration_bounds = array<i64: 1>, scalar_prefetch = 0 : i64, scratch_operands = 2 : i64, tpu.core_type = #tpu.core_type<tc>, window_params = [{pipeline_mode = #tpu.pipeline_mode<synchronous>, transform_indices = @transform_0, window_bounds = array<i64: 8, 32>}, {pipeline_mode = #tpu.pipeline_mode<synchronous>, transform_indices = @transform_1, window_bounds = array<i64: 1, 128>}, {pipeline_mode = #tpu.pipeline_mode<synchronous>, transform_indices = @transform_2, window_bounds = array<i64: 32, 384>}, {pipeline_mode = #tpu.pipeline_mode<synchronous>, transform_indices = @transform_3, window_bounds = array<i64: 128, 384>}, {pipeline_mode = #tpu.pipeline_mode<synchronous>, transform_indices = @transform_4, window_bounds = array<i64: 1, 384>}, {pipeline_mode = #tpu.pipeline_mode<synchronous>, transform_indices = @transform_5, window_bounds = array<i64: 1, 128>}, {pipeline_mode = #tpu.pipeline_mode<synchronous>, transform_indices = @transform_6, window_bounds = array<i64: 128, 128>}, {pipeline_mode = #tpu.pipeline_mode<synchronous>, transform_indices = @transform_7, window_bounds = array<i64: 1, 128>}, {pipeline_mode = #tpu.pipeline_mode<synchronous>, transform_indices = @transform_8, window_bounds = array<i64: 8, 128>}, {pipeline_mode = #tpu.pipeline_mode<synchronous>, transform_indices = @transform_9, window_bounds = array<i64: 1, 128>}]} {
    %c0 = arith.constant 0 : index
    %c0_0 = arith.constant 0 : index
    %0 = vector.load %arg1[%c0, %c0_0] : memref<8x32xbf16, #tpu.memory_space<vmem>>, vector<8x32xbf16>
    %c0_1 = arith.constant 0 : index
    %c0_2 = arith.constant 0 : index
    %1 = vector.load %arg3[%c0_1, %c0_2] : memref<32x384xbf16, #tpu.memory_space<vmem>>, vector<32x384xbf16>
    %cst = arith.constant dense<0.000000e+00> : vector<8x384xf32>
    %2 = tpu.matmul %0, %1, %cst {dimension_numbers = #tpu.dot_dimension_numbers<[1], [0], [0], [1], [0, 0, 1, 1], [], []>} : vector<8x32xbf16>, vector<32x384xbf16>, vector<8x384xf32> -> vector<8x384xf32>
    %c0_3 = arith.constant 0 : index
    %c0_4 = arith.constant 0 : index
    %3 = vector.load %arg5[%c0_3, %c0_4] : memref<1x384xf32, #tpu.memory_space<vmem>>, vector<1x384xf32>
    %4 = vector.broadcast %3 : vector<1x384xf32> to vector<8x384xf32>
    %5 = arith.addf %2, %4 : vector<8x384xf32>
    %c0_5 = arith.constant 0 : index
    %c0_6 = arith.constant 0 : index
    %6 = vector.load %arg11[%c0_5, %c0_6] : memref<8x384xf32, #tpu.memory_space<vmem>>, vector<8x384xf32>
    tpu.vector_store %arg11[%c0_5, %c0_6], %5 {strides = array<i32>} : memref<8x384xf32, #tpu.memory_space<vmem>>, vector<8x384xf32>,
    %cst_7 = arith.constant 0.000000e+00 : f32
    %7 = vector.broadcast %cst_7 : f32 to vector<8x128xf32>
    %c0_8 = arith.constant 0 : index
    %c0_9 = arith.constant 0 : index
    %8 = vector.load %arg12[%c0_8, %c0_9] : memref<8x128xf32, #tpu.memory_space<vmem>>, vector<8x128xf32>
    tpu.vector_store %arg12[%c0_8, %c0_9], %7 {strides = array<i32>} : memref<8x128xf32, #tpu.memory_space<vmem>>, vector<8x128xf32>,
    %c0_10 = arith.constant 0 : index
    %c0_11 = arith.constant 0 : index
    %9 = vector.load %arg2[%c0_10, %c0_11] : memref<1x128xf32, #tpu.memory_space<vmem>>, vector<1x128xf32>
    %c0_i32 = arith.constant 0 : i32
    %10 = arith.index_cast %c0_i32 : i32 to index
    %c0_12 = arith.constant 0 : index
    %11 = vector.load %arg11[%10, %c0_12] : memref<8x384xf32, #tpu.memory_space<vmem>>, vector<1x384xf32>
    %12 = arith.truncf %9 : vector<1x128xf32> to vector<1x128xbf16>
    %c0_13 = arith.constant 0 : index
    %c0_14 = arith.constant 0 : index
    %13 = vector.load %arg4[%c0_13, %c0_14] : memref<128x384xbf16, #tpu.memory_space<vmem>>, vector<128x384xbf16>
    %cst_15 = arith.constant dense<0.000000e+00> : vector<1x384xf32>
    %14 = tpu.matmul %12, %13, %cst_15 {dimension_numbers = #tpu.dot_dimension_numbers<[1], [0], [0], [1], [0, 0, 1, 1], [], []>} : vector<1x128xbf16>, vector<128x384xbf16>, vector<1x384xf32> -> vector<1x384xf32>
    %15 = vector.extract_strided_slice %11 {offsets = [0, 0], sizes = [1, 128], strides = [1, 1]} : vector<1x384xf32> to vector<1x128xf32>
    %16 = vector.extract_strided_slice %14 {offsets = [0, 0], sizes = [1, 128], strides = [1, 1]} : vector<1x384xf32> to vector<1x128xf32>
    %17 = arith.addf %15, %16 : vector<1x128xf32>
    %18 = arith.negf %17 : vector<1x128xf32>
    %19 = math.exp %18 : vector<1x128xf32>
    %cst_16 = arith.constant 1.000000e+00 : f32
    %20 = vector.broadcast %cst_16 : f32 to vector<1x128xf32>
    %21 = arith.addf %20, %19 : vector<1x128xf32>
    %22 = arith.divf %20, %21 : vector<1x128xf32>
    %23 = vector.extract_strided_slice %11 {offsets = [0, 128], sizes = [1, 128], strides = [1, 1]} : vector<1x384xf32> to vector<1x128xf32>
    %24 = vector.extract_strided_slice %14 {offsets = [0, 128], sizes = [1, 128], strides = [1, 1]} : vector<1x384xf32> to vector<1x128xf32>
    %25 = arith.addf %23, %24 : vector<1x128xf32>
    %26 = arith.negf %25 : vector<1x128xf32>
    %27 = math.exp %26 : vector<1x128xf32>
    %cst_17 = arith.constant 1.000000e+00 : f32
    %28 = vector.broadcast %cst_17 : f32 to vector<1x128xf32>
    %29 = arith.addf %28, %27 : vector<1x128xf32>
    %30 = arith.divf %28, %29 : vector<1x128xf32>
    %31 = vector.extract_strided_slice %11 {offsets = [0, 256], sizes = [1, 128], strides = [1, 1]} : vector<1x384xf32> to vector<1x128xf32>
    %32 = vector.extract_strided_slice %14 {offsets = [0, 256], sizes = [1, 128], strides = [1, 1]} : vector<1x384xf32> to vector<1x128xf32>
    %c0_18 = arith.constant 0 : index
    %c0_19 = arith.constant 0 : index
    %33 = vector.load %arg6[%c0_18, %c0_19] : memref<1x128xf32, #tpu.memory_space<vmem>>, vector<1x128xf32>
    %34 = arith.addf %32, %33 : vector<1x128xf32>
    %35 = arith.mulf %22, %34 : vector<1x128xf32>
    %36 = arith.addf %31, %35 : vector<1x128xf32>
    %37 = math.tanh %36 : vector<1x128xf32>
    %cst_20 = arith.constant 1.000000e+00 : f32
    %38 = vector.broadcast %cst_20 : f32 to vector<1x128xf32>
    %39 = arith.subf %38, %30 : vector<1x128xf32>
    %40 = arith.mulf %39, %37 : vector<1x128xf32>
    %41 = arith.mulf %30, %9 : vector<1x128xf32>
    %42 = arith.addf %40, %41 : vector<1x128xf32>
    %43 = arith.index_cast %c0_i32 : i32 to index
    %c0_21 = arith.constant 0 : index
    %44 = vector.load %arg12[%43, %c0_21] : memref<8x128xf32, #tpu.memory_space<vmem>>, vector<1x128xf32>
    tpu.vector_store %arg12[%43, %c0_21], %42 {strides = array<i32>} : memref<8x128xf32, #tpu.memory_space<vmem>>, vector<1x128xf32>,
    %c1_i32 = arith.constant 1 : i32
    %45 = arith.index_cast %c1_i32 : i32 to index
    %c0_22 = arith.constant 0 : index
    %46 = vector.load %arg11[%45, %c0_22] : memref<8x384xf32, #tpu.memory_space<vmem>>, vector<1x384xf32>
    %47 = arith.truncf %42 : vector<1x128xf32> to vector<1x128xbf16>
    %c0_23 = arith.constant 0 : index
    %c0_24 = arith.constant 0 : index
    %48 = vector.load %arg4[%c0_23, %c0_24] : memref<128x384xbf16, #tpu.memory_space<vmem>>, vector<128x384xbf16>
    %cst_25 = arith.constant dense<0.000000e+00> : vector<1x384xf32>
    %49 = tpu.matmul %47, %48, %cst_25 {dimension_numbers = #tpu.dot_dimension_numbers<[1], [0], [0], [1], [0, 0, 1, 1], [], []>} : vector<1x128xbf16>, vector<128x384xbf16>, vector<1x384xf32> -> vector<1x384xf32>
    %50 = vector.extract_strided_slice %46 {offsets = [0, 0], sizes = [1, 128], strides = [1, 1]} : vector<1x384xf32> to vector<1x128xf32>
    %51 = vector.extract_strided_slice %49 {offsets = [0, 0], sizes = [1, 128], strides = [1, 1]} : vector<1x384xf32> to vector<1x128xf32>
    %52 = arith.addf %50, %51 : vector<1x128xf32>
    %53 = arith.negf %52 : vector<1x128xf32>
    %54 = math.exp %53 : vector<1x128xf32>
    %cst_26 = arith.constant 1.000000e+00 : f32
    %55 = vector.broadcast %cst_26 : f32 to vector<1x128xf32>
    %56 = arith.addf %55, %54 : vector<1x128xf32>
    %57 = arith.divf %55, %56 : vector<1x128xf32>
    %58 = vector.extract_strided_slice %46 {offsets = [0, 128], sizes = [1, 128], strides = [1, 1]} : vector<1x384xf32> to vector<1x128xf32>
    %59 = vector.extract_strided_slice %49 {offsets = [0, 128], sizes = [1, 128], strides = [1, 1]} : vector<1x384xf32> to vector<1x128xf32>
    %60 = arith.addf %58, %59 : vector<1x128xf32>
    %61 = arith.negf %60 : vector<1x128xf32>
    %62 = math.exp %61 : vector<1x128xf32>
    %cst_27 = arith.constant 1.000000e+00 : f32
    %63 = vector.broadcast %cst_27 : f32 to vector<1x128xf32>
    %64 = arith.addf %63, %62 : vector<1x128xf32>
    %65 = arith.divf %63, %64 : vector<1x128xf32>
    %66 = vector.extract_strided_slice %46 {offsets = [0, 256], sizes = [1, 128], strides = [1, 1]} : vector<1x384xf32> to vector<1x128xf32>
    %67 = vector.extract_strided_slice %49 {offsets = [0, 256], sizes = [1, 128], strides = [1, 1]} : vector<1x384xf32> to vector<1x128xf32>
    %c0_28 = arith.constant 0 : index
    %c0_29 = arith.constant 0 : index
    %68 = vector.load %arg6[%c0_28, %c0_29] : memref<1x128xf32, #tpu.memory_space<vmem>>, vector<1x128xf32>
    %69 = arith.addf %67, %68 : vector<1x128xf32>
    %70 = arith.mulf %57, %69 : vector<1x128xf32>
    %71 = arith.addf %66, %70 : vector<1x128xf32>
    %72 = math.tanh %71 : vector<1x128xf32>
    %cst_30 = arith.constant 1.000000e+00 : f32
    %73 = vector.broadcast %cst_30 : f32 to vector<1x128xf32>
    %74 = arith.subf %73, %65 : vector<1x128xf32>
    %75 = arith.mulf %74, %72 : vector<1x128xf32>
    %76 = arith.mulf %65, %42 : vector<1x128xf32>
    %77 = arith.addf %75, %76 : vector<1x128xf32>
    %78 = arith.index_cast %c1_i32 : i32 to index
    %c0_31 = arith.constant 0 : index
    %79 = vector.load %arg12[%78, %c0_31] : memref<8x128xf32, #tpu.memory_space<vmem>>, vector<1x128xf32>
    tpu.vector_store %arg12[%78, %c0_31], %77 {strides = array<i32>} : memref<8x128xf32, #tpu.memory_space<vmem>>, vector<1x128xf32>,
    %c2_i32 = arith.constant 2 : i32
    %80 = arith.index_cast %c2_i32 : i32 to index
    %c0_32 = arith.constant 0 : index
    %81 = vector.load %arg11[%80, %c0_32] : memref<8x384xf32, #tpu.memory_space<vmem>>, vector<1x384xf32>
    %82 = arith.truncf %77 : vector<1x128xf32> to vector<1x128xbf16>
    %c0_33 = arith.constant 0 : index
    %c0_34 = arith.constant 0 : index
    %83 = vector.load %arg4[%c0_33, %c0_34] : memref<128x384xbf16, #tpu.memory_space<vmem>>, vector<128x384xbf16>
    %cst_35 = arith.constant dense<0.000000e+00> : vector<1x384xf32>
    %84 = tpu.matmul %82, %83, %cst_35 {dimension_numbers = #tpu.dot_dimension_numbers<[1], [0], [0], [1], [0, 0, 1, 1], [], []>} : vector<1x128xbf16>, vector<128x384xbf16>, vector<1x384xf32> -> vector<1x384xf32>
    %85 = vector.extract_strided_slice %81 {offsets = [0, 0], sizes = [1, 128], strides = [1, 1]} : vector<1x384xf32> to vector<1x128xf32>
    %86 = vector.extract_strided_slice %84 {offsets = [0, 0], sizes = [1, 128], strides = [1, 1]} : vector<1x384xf32> to vector<1x128xf32>
    %87 = arith.addf %85, %86 : vector<1x128xf32>
    %88 = arith.negf %87 : vector<1x128xf32>
    %89 = math.exp %88 : vector<1x128xf32>
    %cst_36 = arith.constant 1.000000e+00 : f32
    %90 = vector.broadcast %cst_36 : f32 to vector<1x128xf32>
    %91 = arith.addf %90, %89 : vector<1x128xf32>
    %92 = arith.divf %90, %91 : vector<1x128xf32>
    %93 = vector.extract_strided_slice %81 {offsets = [0, 128], sizes = [1, 128], strides = [1, 1]} : vector<1x384xf32> to vector<1x128xf32>
    %94 = vector.extract_strided_slice %84 {offsets = [0, 128], sizes = [1, 128], strides = [1, 1]} : vector<1x384xf32> to vector<1x128xf32>
    %95 = arith.addf %93, %94 : vector<1x128xf32>
    %96 = arith.negf %95 : vector<1x128xf32>
    %97 = math.exp %96 : vector<1x128xf32>
    %cst_37 = arith.constant 1.000000e+00 : f32
    %98 = vector.broadcast %cst_37 : f32 to vector<1x128xf32>
    %99 = arith.addf %98, %97 : vector<1x128xf32>
    %100 = arith.divf %98, %99 : vector<1x128xf32>
    %101 = vector.extract_strided_slice %81 {offsets = [0, 256], sizes = [1, 128], strides = [1, 1]} : vector<1x384xf32> to vector<1x128xf32>
    %102 = vector.extract_strided_slice %84 {offsets = [0, 256], sizes = [1, 128], strides = [1, 1]} : vector<1x384xf32> to vector<1x128xf32>
    %c0_38 = arith.constant 0 : index
    %c0_39 = arith.constant 0 : index
    %103 = vector.load %arg6[%c0_38, %c0_39] : memref<1x128xf32, #tpu.memory_space<vmem>>, vector<1x128xf32>
    %104 = arith.addf %102, %103 : vector<1x128xf32>
    %105 = arith.mulf %92, %104 : vector<1x128xf32>
    %106 = arith.addf %101, %105 : vector<1x128xf32>
    %107 = math.tanh %106 : vector<1x128xf32>
    %cst_40 = arith.constant 1.000000e+00 : f32
    %108 = vector.broadcast %cst_40 : f32 to vector<1x128xf32>
    %109 = arith.subf %108, %100 : vector<1x128xf32>
    %110 = arith.mulf %109, %107 : vector<1x128xf32>
    %111 = arith.mulf %100, %77 : vector<1x128xf32>
    %112 = arith.addf %110, %111 : vector<1x128xf32>
    %113 = arith.index_cast %c2_i32 : i32 to index
    %c0_41 = arith.constant 0 : index
    %114 = vector.load %arg12[%113, %c0_41] : memref<8x128xf32, #tpu.memory_space<vmem>>, vector<1x128xf32>
    tpu.vector_store %arg12[%113, %c0_41], %112 {strides = array<i32>} : memref<8x128xf32, #tpu.memory_space<vmem>>, vector<1x128xf32>,
    %c3_i32 = arith.constant 3 : i32
    %115 = arith.index_cast %c3_i32 : i32 to index
    %c0_42 = arith.constant 0 : index
    %116 = vector.load %arg11[%115, %c0_42] : memref<8x384xf32, #tpu.memory_space<vmem>>, vector<1x384xf32>
    %117 = arith.truncf %112 : vector<1x128xf32> to vector<1x128xbf16>
    %c0_43 = arith.constant 0 : index
    %c0_44 = arith.constant 0 : index
    %118 = vector.load %arg4[%c0_43, %c0_44] : memref<128x384xbf16, #tpu.memory_space<vmem>>, vector<128x384xbf16>
    %cst_45 = arith.constant dense<0.000000e+00> : vector<1x384xf32>
    %119 = tpu.matmul %117, %118, %cst_45 {dimension_numbers = #tpu.dot_dimension_numbers<[1], [0], [0], [1], [0, 0, 1, 1], [], []>} : vector<1x128xbf16>, vector<128x384xbf16>, vector<1x384xf32> -> vector<1x384xf32>
    %120 = vector.extract_strided_slice %116 {offsets = [0, 0], sizes = [1, 128], strides = [1, 1]} : vector<1x384xf32> to vector<1x128xf32>
    %121 = vector.extract_strided_slice %119 {offsets = [0, 0], sizes = [1, 128], strides = [1, 1]} : vector<1x384xf32> to vector<1x128xf32>
    %122 = arith.addf %120, %121 : vector<1x128xf32>
    %123 = arith.negf %122 : vector<1x128xf32>
    %124 = math.exp %123 : vector<1x128xf32>
    %cst_46 = arith.constant 1.000000e+00 : f32
    %125 = vector.broadcast %cst_46 : f32 to vector<1x128xf32>
    %126 = arith.addf %125, %124 : vector<1x128xf32>
    %127 = arith.divf %125, %126 : vector<1x128xf32>
    %128 = vector.extract_strided_slice %116 {offsets = [0, 128], sizes = [1, 128], strides = [1, 1]} : vector<1x384xf32> to vector<1x128xf32>
    %129 = vector.extract_strided_slice %119 {offsets = [0, 128], sizes = [1, 128], strides = [1, 1]} : vector<1x384xf32> to vector<1x128xf32>
    %130 = arith.addf %128, %129 : vector<1x128xf32>
    %131 = arith.negf %130 : vector<1x128xf32>
    %132 = math.exp %131 : vector<1x128xf32>
    %cst_47 = arith.constant 1.000000e+00 : f32
    %133 = vector.broadcast %cst_47 : f32 to vector<1x128xf32>
    %134 = arith.addf %133, %132 : vector<1x128xf32>
    %135 = arith.divf %133, %134 : vector<1x128xf32>
    %136 = vector.extract_strided_slice %116 {offsets = [0, 256], sizes = [1, 128], strides = [1, 1]} : vector<1x384xf32> to vector<1x128xf32>
    %137 = vector.extract_strided_slice %119 {offsets = [0, 256], sizes = [1, 128], strides = [1, 1]} : vector<1x384xf32> to vector<1x128xf32>
    %c0_48 = arith.constant 0 : index
    %c0_49 = arith.constant 0 : index
    %138 = vector.load %arg6[%c0_48, %c0_49] : memref<1x128xf32, #tpu.memory_space<vmem>>, vector<1x128xf32>
    %139 = arith.addf %137, %138 : vector<1x128xf32>
    %140 = arith.mulf %127, %139 : vector<1x128xf32>
    %141 = arith.addf %136, %140 : vector<1x128xf32>
    %142 = math.tanh %141 : vector<1x128xf32>
    %cst_50 = arith.constant 1.000000e+00 : f32
    %143 = vector.broadcast %cst_50 : f32 to vector<1x128xf32>
    %144 = arith.subf %143, %135 : vector<1x128xf32>
    %145 = arith.mulf %144, %142 : vector<1x128xf32>
    %146 = arith.mulf %135, %112 : vector<1x128xf32>
    %147 = arith.addf %145, %146 : vector<1x128xf32>
    %148 = arith.index_cast %c3_i32 : i32 to index
    %c0_51 = arith.constant 0 : index
    %149 = vector.load %arg12[%148, %c0_51] : memref<8x128xf32, #tpu.memory_space<vmem>>, vector<1x128xf32>
    tpu.vector_store %arg12[%148, %c0_51], %147 {strides = array<i32>} : memref<8x128xf32, #tpu.memory_space<vmem>>, vector<1x128xf32>,
    %c4_i32 = arith.constant 4 : i32
    %150 = arith.index_cast %c4_i32 : i32 to index
    %c0_52 = arith.constant 0 : index
    %151 = vector.load %arg11[%150, %c0_52] : memref<8x384xf32, #tpu.memory_space<vmem>>, vector<1x384xf32>
    %152 = arith.truncf %147 : vector<1x128xf32> to vector<1x128xbf16>
    %c0_53 = arith.constant 0 : index
    %c0_54 = arith.constant 0 : index
    %153 = vector.load %arg4[%c0_53, %c0_54] : memref<128x384xbf16, #tpu.memory_space<vmem>>, vector<128x384xbf16>
    %cst_55 = arith.constant dense<0.000000e+00> : vector<1x384xf32>
    %154 = tpu.matmul %152, %153, %cst_55 {dimension_numbers = #tpu.dot_dimension_numbers<[1], [0], [0], [1], [0, 0, 1, 1], [], []>} : vector<1x128xbf16>, vector<128x384xbf16>, vector<1x384xf32> -> vector<1x384xf32>
    %155 = vector.extract_strided_slice %151 {offsets = [0, 0], sizes = [1, 128], strides = [1, 1]} : vector<1x384xf32> to vector<1x128xf32>
    %156 = vector.extract_strided_slice %154 {offsets = [0, 0], sizes = [1, 128], strides = [1, 1]} : vector<1x384xf32> to vector<1x128xf32>
    %157 = arith.addf %155, %156 : vector<1x128xf32>
    %158 = arith.negf %157 : vector<1x128xf32>
    %159 = math.exp %158 : vector<1x128xf32>
    %cst_56 = arith.constant 1.000000e+00 : f32
    %160 = vector.broadcast %cst_56 : f32 to vector<1x128xf32>
    %161 = arith.addf %160, %159 : vector<1x128xf32>
    %162 = arith.divf %160, %161 : vector<1x128xf32>
    %163 = vector.extract_strided_slice %151 {offsets = [0, 128], sizes = [1, 128], strides = [1, 1]} : vector<1x384xf32> to vector<1x128xf32>
    %164 = vector.extract_strided_slice %154 {offsets = [0, 128], sizes = [1, 128], strides = [1, 1]} : vector<1x384xf32> to vector<1x128xf32>
    %165 = arith.addf %163, %164 : vector<1x128xf32>
    %166 = arith.negf %165 : vector<1x128xf32>
    %167 = math.exp %166 : vector<1x128xf32>
    %cst_57 = arith.constant 1.000000e+00 : f32
    %168 = vector.broadcast %cst_57 : f32 to vector<1x128xf32>
    %169 = arith.addf %168, %167 : vector<1x128xf32>
    %170 = arith.divf %168, %169 : vector<1x128xf32>
    %171 = vector.extract_strided_slice %151 {offsets = [0, 256], sizes = [1, 128], strides = [1, 1]} : vector<1x384xf32> to vector<1x128xf32>
    %172 = vector.extract_strided_slice %154 {offsets = [0, 256], sizes = [1, 128], strides = [1, 1]} : vector<1x384xf32> to vector<1x128xf32>
    %c0_58 = arith.constant 0 : index
    %c0_59 = arith.constant 0 : index
    %173 = vector.load %arg6[%c0_58, %c0_59] : memref<1x128xf32, #tpu.memory_space<vmem>>, vector<1x128xf32>
    %174 = arith.addf %172, %173 : vector<1x128xf32>
    %175 = arith.mulf %162, %174 : vector<1x128xf32>
    %176 = arith.addf %171, %175 : vector<1x128xf32>
    %177 = math.tanh %176 : vector<1x128xf32>
    %cst_60 = arith.constant 1.000000e+00 : f32
    %178 = vector.broadcast %cst_60 : f32 to vector<1x128xf32>
    %179 = arith.subf %178, %170 : vector<1x128xf32>
    %180 = arith.mulf %179, %177 : vector<1x128xf32>
    %181 = arith.mulf %170, %147 : vector<1x128xf32>
    %182 = arith.addf %180, %181 : vector<1x128xf32>
    %183 = arith.index_cast %c4_i32 : i32 to index
    %c0_61 = arith.constant 0 : index
    %184 = vector.load %arg12[%183, %c0_61] : memref<8x128xf32, #tpu.memory_space<vmem>>, vector<1x128xf32>
    tpu.vector_store %arg12[%183, %c0_61], %182 {strides = array<i32>} : memref<8x128xf32, #tpu.memory_space<vmem>>, vector<1x128xf32>,
    %c5_i32 = arith.constant 5 : i32
    %185 = arith.index_cast %c5_i32 : i32 to index
    %c0_62 = arith.constant 0 : index
    %186 = vector.load %arg11[%185, %c0_62] : memref<8x384xf32, #tpu.memory_space<vmem>>, vector<1x384xf32>
    %187 = arith.truncf %182 : vector<1x128xf32> to vector<1x128xbf16>
    %c0_63 = arith.constant 0 : index
    %c0_64 = arith.constant 0 : index
    %188 = vector.load %arg4[%c0_63, %c0_64] : memref<128x384xbf16, #tpu.memory_space<vmem>>, vector<128x384xbf16>
    %cst_65 = arith.constant dense<0.000000e+00> : vector<1x384xf32>
    %189 = tpu.matmul %187, %188, %cst_65 {dimension_numbers = #tpu.dot_dimension_numbers<[1], [0], [0], [1], [0, 0, 1, 1], [], []>} : vector<1x128xbf16>, vector<128x384xbf16>, vector<1x384xf32> -> vector<1x384xf32>
    %190 = vector.extract_strided_slice %186 {offsets = [0, 0], sizes = [1, 128], strides = [1, 1]} : vector<1x384xf32> to vector<1x128xf32>
    %191 = vector.extract_strided_slice %189 {offsets = [0, 0], sizes = [1, 128], strides = [1, 1]} : vector<1x384xf32> to vector<1x128xf32>
    %192 = arith.addf %190, %191 : vector<1x128xf32>
    %193 = arith.negf %192 : vector<1x128xf32>
    %194 = math.exp %193 : vector<1x128xf32>
    %cst_66 = arith.constant 1.000000e+00 : f32
    %195 = vector.broadcast %cst_66 : f32 to vector<1x128xf32>
    %196 = arith.addf %195, %194 : vector<1x128xf32>
    %197 = arith.divf %195, %196 : vector<1x128xf32>
    %198 = vector.extract_strided_slice %186 {offsets = [0, 128], sizes = [1, 128], strides = [1, 1]} : vector<1x384xf32> to vector<1x128xf32>
    %199 = vector.extract_strided_slice %189 {offsets = [0, 128], sizes = [1, 128], strides = [1, 1]} : vector<1x384xf32> to vector<1x128xf32>
    %200 = arith.addf %198, %199 : vector<1x128xf32>
    %201 = arith.negf %200 : vector<1x128xf32>
    %202 = math.exp %201 : vector<1x128xf32>
    %cst_67 = arith.constant 1.000000e+00 : f32
    %203 = vector.broadcast %cst_67 : f32 to vector<1x128xf32>
    %204 = arith.addf %203, %202 : vector<1x128xf32>
    %205 = arith.divf %203, %204 : vector<1x128xf32>
    %206 = vector.extract_strided_slice %186 {offsets = [0, 256], sizes = [1, 128], strides = [1, 1]} : vector<1x384xf32> to vector<1x128xf32>
    %207 = vector.extract_strided_slice %189 {offsets = [0, 256], sizes = [1, 128], strides = [1, 1]} : vector<1x384xf32> to vector<1x128xf32>
    %c0_68 = arith.constant 0 : index
    %c0_69 = arith.constant 0 : index
    %208 = vector.load %arg6[%c0_68, %c0_69] : memref<1x128xf32, #tpu.memory_space<vmem>>, vector<1x128xf32>
    %209 = arith.addf %207, %208 : vector<1x128xf32>
    %210 = arith.mulf %197, %209 : vector<1x128xf32>
    %211 = arith.addf %206, %210 : vector<1x128xf32>
    %212 = math.tanh %211 : vector<1x128xf32>
    %cst_70 = arith.constant 1.000000e+00 : f32
    %213 = vector.broadcast %cst_70 : f32 to vector<1x128xf32>
    %214 = arith.subf %213, %205 : vector<1x128xf32>
    %215 = arith.mulf %214, %212 : vector<1x128xf32>
    %216 = arith.mulf %205, %182 : vector<1x128xf32>
    %217 = arith.addf %215, %216 : vector<1x128xf32>
    %218 = arith.index_cast %c5_i32 : i32 to index
    %c0_71 = arith.constant 0 : index
    %219 = vector.load %arg12[%218, %c0_71] : memref<8x128xf32, #tpu.memory_space<vmem>>, vector<1x128xf32>
    tpu.vector_store %arg12[%218, %c0_71], %217 {strides = array<i32>} : memref<8x128xf32, #tpu.memory_space<vmem>>, vector<1x128xf32>,
    %c6_i32 = arith.constant 6 : i32
    %220 = arith.index_cast %c6_i32 : i32 to index
    %c0_72 = arith.constant 0 : index
    %221 = vector.load %arg11[%220, %c0_72] : memref<8x384xf32, #tpu.memory_space<vmem>>, vector<1x384xf32>
    %222 = arith.truncf %217 : vector<1x128xf32> to vector<1x128xbf16>
    %c0_73 = arith.constant 0 : index
    %c0_74 = arith.constant 0 : index
    %223 = vector.load %arg4[%c0_73, %c0_74] : memref<128x384xbf16, #tpu.memory_space<vmem>>, vector<128x384xbf16>
    %cst_75 = arith.constant dense<0.000000e+00> : vector<1x384xf32>
    %224 = tpu.matmul %222, %223, %cst_75 {dimension_numbers = #tpu.dot_dimension_numbers<[1], [0], [0], [1], [0, 0, 1, 1], [], []>} : vector<1x128xbf16>, vector<128x384xbf16>, vector<1x384xf32> -> vector<1x384xf32>
    %225 = vector.extract_strided_slice %221 {offsets = [0, 0], sizes = [1, 128], strides = [1, 1]} : vector<1x384xf32> to vector<1x128xf32>
    %226 = vector.extract_strided_slice %224 {offsets = [0, 0], sizes = [1, 128], strides = [1, 1]} : vector<1x384xf32> to vector<1x128xf32>
    %227 = arith.addf %225, %226 : vector<1x128xf32>
    %228 = arith.negf %227 : vector<1x128xf32>
    %229 = math.exp %228 : vector<1x128xf32>
    %cst_76 = arith.constant 1.000000e+00 : f32
    %230 = vector.broadcast %cst_76 : f32 to vector<1x128xf32>
    %231 = arith.addf %230, %229 : vector<1x128xf32>
    %232 = arith.divf %230, %231 : vector<1x128xf32>
    %233 = vector.extract_strided_slice %221 {offsets = [0, 128], sizes = [1, 128], strides = [1, 1]} : vector<1x384xf32> to vector<1x128xf32>
    %234 = vector.extract_strided_slice %224 {offsets = [0, 128], sizes = [1, 128], strides = [1, 1]} : vector<1x384xf32> to vector<1x128xf32>
    %235 = arith.addf %233, %234 : vector<1x128xf32>
    %236 = arith.negf %235 : vector<1x128xf32>
    %237 = math.exp %236 : vector<1x128xf32>
    %cst_77 = arith.constant 1.000000e+00 : f32
    %238 = vector.broadcast %cst_77 : f32 to vector<1x128xf32>
    %239 = arith.addf %238, %237 : vector<1x128xf32>
    %240 = arith.divf %238, %239 : vector<1x128xf32>
    %241 = vector.extract_strided_slice %221 {offsets = [0, 256], sizes = [1, 128], strides = [1, 1]} : vector<1x384xf32> to vector<1x128xf32>
    %242 = vector.extract_strided_slice %224 {offsets = [0, 256], sizes = [1, 128], strides = [1, 1]} : vector<1x384xf32> to vector<1x128xf32>
    %c0_78 = arith.constant 0 : index
    %c0_79 = arith.constant 0 : index
    %243 = vector.load %arg6[%c0_78, %c0_79] : memref<1x128xf32, #tpu.memory_space<vmem>>, vector<1x128xf32>
    %244 = arith.addf %242, %243 : vector<1x128xf32>
    %245 = arith.mulf %232, %244 : vector<1x128xf32>
    %246 = arith.addf %241, %245 : vector<1x128xf32>
    %247 = math.tanh %246 : vector<1x128xf32>
    %cst_80 = arith.constant 1.000000e+00 : f32
    %248 = vector.broadcast %cst_80 : f32 to vector<1x128xf32>
    %249 = arith.subf %248, %240 : vector<1x128xf32>
    %250 = arith.mulf %249, %247 : vector<1x128xf32>
    %251 = arith.mulf %240, %217 : vector<1x128xf32>
    %252 = arith.addf %250, %251 : vector<1x128xf32>
    %253 = arith.index_cast %c6_i32 : i32 to index
    %c0_81 = arith.constant 0 : index
    %254 = vector.load %arg12[%253, %c0_81] : memref<8x128xf32, #tpu.memory_space<vmem>>, vector<1x128xf32>
    tpu.vector_store %arg12[%253, %c0_81], %252 {strides = array<i32>} : memref<8x128xf32, #tpu.memory_space<vmem>>, vector<1x128xf32>,
    %c7_i32 = arith.constant 7 : i32
    %255 = arith.index_cast %c7_i32 : i32 to index
    %c0_82 = arith.constant 0 : index
    %256 = vector.load %arg11[%255, %c0_82] : memref<8x384xf32, #tpu.memory_space<vmem>>, vector<1x384xf32>
    %257 = arith.truncf %252 : vector<1x128xf32> to vector<1x128xbf16>
    %c0_83 = arith.constant 0 : index
    %c0_84 = arith.constant 0 : index
    %258 = vector.load %arg4[%c0_83, %c0_84] : memref<128x384xbf16, #tpu.memory_space<vmem>>, vector<128x384xbf16>
    %cst_85 = arith.constant dense<0.000000e+00> : vector<1x384xf32>
    %259 = tpu.matmul %257, %258, %cst_85 {dimension_numbers = #tpu.dot_dimension_numbers<[1], [0], [0], [1], [0, 0, 1, 1], [], []>} : vector<1x128xbf16>, vector<128x384xbf16>, vector<1x384xf32> -> vector<1x384xf32>
    %260 = vector.extract_strided_slice %256 {offsets = [0, 0], sizes = [1, 128], strides = [1, 1]} : vector<1x384xf32> to vector<1x128xf32>
    %261 = vector.extract_strided_slice %259 {offsets = [0, 0], sizes = [1, 128], strides = [1, 1]} : vector<1x384xf32> to vector<1x128xf32>
    %262 = arith.addf %260, %261 : vector<1x128xf32>
    %263 = arith.negf %262 : vector<1x128xf32>
    %264 = math.exp %263 : vector<1x128xf32>
    %cst_86 = arith.constant 1.000000e+00 : f32
    %265 = vector.broadcast %cst_86 : f32 to vector<1x128xf32>
    %266 = arith.addf %265, %264 : vector<1x128xf32>
    %267 = arith.divf %265, %266 : vector<1x128xf32>
    %268 = vector.extract_strided_slice %256 {offsets = [0, 128], sizes = [1, 128], strides = [1, 1]} : vector<1x384xf32> to vector<1x128xf32>
    %269 = vector.extract_strided_slice %259 {offsets = [0, 128], sizes = [1, 128], strides = [1, 1]} : vector<1x384xf32> to vector<1x128xf32>
    %270 = arith.addf %268, %269 : vector<1x128xf32>
    %271 = arith.negf %270 : vector<1x128xf32>
    %272 = math.exp %271 : vector<1x128xf32>
    %cst_87 = arith.constant 1.000000e+00 : f32
    %273 = vector.broadcast %cst_87 : f32 to vector<1x128xf32>
    %274 = arith.addf %273, %272 : vector<1x128xf32>
    %275 = arith.divf %273, %274 : vector<1x128xf32>
    %276 = vector.extract_strided_slice %256 {offsets = [0, 256], sizes = [1, 128], strides = [1, 1]} : vector<1x384xf32> to vector<1x128xf32>
    %277 = vector.extract_strided_slice %259 {offsets = [0, 256], sizes = [1, 128], strides = [1, 1]} : vector<1x384xf32> to vector<1x128xf32>
    %c0_88 = arith.constant 0 : index
    %c0_89 = arith.constant 0 : index
    %278 = vector.load %arg6[%c0_88, %c0_89] : memref<1x128xf32, #tpu.memory_space<vmem>>, vector<1x128xf32>
    %279 = arith.addf %277, %278 : vector<1x128xf32>
    %280 = arith.mulf %267, %279 : vector<1x128xf32>
    %281 = arith.addf %276, %280 : vector<1x128xf32>
    %282 = math.tanh %281 : vector<1x128xf32>
    %cst_90 = arith.constant 1.000000e+00 : f32
    %283 = vector.broadcast %cst_90 : f32 to vector<1x128xf32>
    %284 = arith.subf %283, %275 : vector<1x128xf32>
    %285 = arith.mulf %284, %282 : vector<1x128xf32>
    %286 = arith.mulf %275, %252 : vector<1x128xf32>
    %287 = arith.addf %285, %286 : vector<1x128xf32>
    %288 = arith.index_cast %c7_i32 : i32 to index
    %c0_91 = arith.constant 0 : index
    %289 = vector.load %arg12[%288, %c0_91] : memref<8x128xf32, #tpu.memory_space<vmem>>, vector<1x128xf32>
    tpu.vector_store %arg12[%288, %c0_91], %287 {strides = array<i32>} : memref<8x128xf32, #tpu.memory_space<vmem>>, vector<1x128xf32>,
    %c8_i32 = arith.constant 8 : i32
    %c0_92 = arith.constant 0 : index
    %c0_93 = arith.constant 0 : index
    %290 = vector.load %arg12[%c0_92, %c0_93] : memref<8x128xf32, #tpu.memory_space<vmem>>, vector<8x128xf32>
    %cst_94 = arith.constant 0.000000e+00 : f32
    %291 = vector.broadcast %cst_94 : f32 to vector<8x128xf32>
    %292 = arith.maximumf %290, %291 : vector<8x128xf32>
    %293 = arith.truncf %292 : vector<8x128xf32> to vector<8x128xbf16>
    %c0_95 = arith.constant 0 : index
    %c0_96 = arith.constant 0 : index
    %294 = vector.load %arg7[%c0_95, %c0_96] : memref<128x128xbf16, #tpu.memory_space<vmem>>, vector<128x128xbf16>
    %cst_97 = arith.constant dense<0.000000e+00> : vector<8x128xf32>
    %295 = tpu.matmul %293, %294, %cst_97 {dimension_numbers = #tpu.dot_dimension_numbers<[1], [0], [0], [1], [0, 0, 1, 1], [], []>} : vector<8x128xbf16>, vector<128x128xbf16>, vector<8x128xf32> -> vector<8x128xf32>
    %c0_98 = arith.constant 0 : index
    %c0_99 = arith.constant 0 : index
    %296 = vector.load %arg8[%c0_98, %c0_99] : memref<1x128xf32, #tpu.memory_space<vmem>>, vector<1x128xf32>
    %297 = vector.broadcast %296 : vector<1x128xf32> to vector<8x128xf32>
    %298 = arith.addf %295, %297 : vector<8x128xf32>
    %c0_100 = arith.constant 0 : index
    %c0_101 = arith.constant 0 : index
    %299 = vector.load %arg9[%c0_100, %c0_101] : memref<8x128xf32, #tpu.memory_space<vmem>>, vector<8x128xf32>
    tpu.vector_store %arg9[%c0_100, %c0_101], %298 {strides = array<i32>} : memref<8x128xf32, #tpu.memory_space<vmem>>, vector<8x128xf32>,
    %c0_102 = arith.constant 0 : index
    %c0_103 = arith.constant 0 : index
    %300 = vector.load %arg10[%c0_102, %c0_103] : memref<1x128xf32, #tpu.memory_space<vmem>>, vector<1x128xf32>
    tpu.vector_store %arg10[%c0_102, %c0_103], %287 {strides = array<i32>} : memref<1x128xf32, #tpu.memory_space<vmem>>, vector<1x128xf32>,
    return
  }
  func.func @transform_0(%arg0: i32) -> (i32, i32) {
    %c0_i32 = arith.constant 0 : i32
    %c0_i32_0 = arith.constant 0 : i32
    %c0_i32_1 = arith.constant 0 : i32
    return %c0_i32, %c0_i32_0 : i32, i32
  }
  func.func @transform_1(%arg0: i32) -> (i32, i32) {
    %c0_i32 = arith.constant 0 : i32
    %c0_i32_0 = arith.constant 0 : i32
    %c0_i32_1 = arith.constant 0 : i32
    return %c0_i32, %c0_i32_0 : i32, i32
  }
  func.func @transform_2(%arg0: i32) -> (i32, i32) {
    %c0_i32 = arith.constant 0 : i32
    %c0_i32_0 = arith.constant 0 : i32
    %c0_i32_1 = arith.constant 0 : i32
    return %c0_i32, %c0_i32_0 : i32, i32
  }
  func.func @transform_3(%arg0: i32) -> (i32, i32) {
    %c0_i32 = arith.constant 0 : i32
    %c0_i32_0 = arith.constant 0 : i32
    %c0_i32_1 = arith.constant 0 : i32
    return %c0_i32, %c0_i32_0 : i32, i32
  }
  func.func @transform_4(%arg0: i32) -> (i32, i32) {
    %c0_i32 = arith.constant 0 : i32
    %c0_i32_0 = arith.constant 0 : i32
    %c0_i32_1 = arith.constant 0 : i32
    return %c0_i32, %c0_i32_0 : i32, i32
  }
  func.func @transform_5(%arg0: i32) -> (i32, i32) {
    %c0_i32 = arith.constant 0 : i32
    %c0_i32_0 = arith.constant 0 : i32
    %c0_i32_1 = arith.constant 0 : i32
    return %c0_i32, %c0_i32_0 : i32, i32
  }
  func.func @transform_6(%arg0: i32) -> (i32, i32) {
    %c0_i32 = arith.constant 0 : i32
    %c0_i32_0 = arith.constant 0 : i32
    %c0_i32_1 = arith.constant 0 : i32
    return %c0_i32, %c0_i32_0 : i32, i32
  }
  func.func @transform_7(%arg0: i32) -> (i32, i32) {
    %c0_i32 = arith.constant 0 : i32
    %c0_i32_0 = arith.constant 0 : i32
    %c0_i32_1 = arith.constant 0 : i32
    return %c0_i32, %c0_i32_0 : i32, i32
  }
  func.func @transform_8(%arg0: i32) -> (i32, i32) {
    %c0_i32 = arith.constant 0 : i32
    %c0_i32_0 = arith.constant 0 : i32
    %c0_i32_1 = arith.constant 0 : i32
    return %c0_i32, %c0_i32_0 : i32, i32
  }
  func.func @transform_9(%arg0: i32) -> (i32, i32) {
    %c0_i32 = arith.constant 0 : i32
    %c0_i32_0 = arith.constant 0 : i32
    %c0_i32_1 = arith.constant 0 : i32
    return %c0_i32, %c0_i32_0 : i32, i32
  }
}

</mosaic_0001>

<llo_original>
// kernel: tpu_custom_call.1
$region0: #{tpu_custom_call.1}
  #allocation0 [shape = 'u32[]', space=smem, size = 0x4, offset = 0x4, fixed_abs, tag = 'smem constant byte address 0x4 - core index']
  #allocation1 [shape = 'u32[144,128]{1,0:T(1,128)}', space=vmem, size = 0x12000, scoped, tag = 'internal scratch']
  #allocation2 [shape = 'f32[8,384]{1,0:T(8,128)}', space=vmem, size = 0x3000, scoped, tag = 'scratch operand']
  #allocation3 [shape = 'f32[8,128]{1,0:T(8,128)}', space=vmem, size = 0x1000, scoped, tag = 'scratch operand']
  %s0 = inlined_call_operand.hbm [shape: bf16[8,32], index: 0, kind: input, shape index: {}]
  %s1 = inlined_call_operand.vmem [shape: f32[1,128], index: 1, kind: input, shape index: {}]
  %s2 = inlined_call_operand.hbm [shape: bf16[32,384], index: 2, kind: input, shape index: {}]
  %s3 = inlined_call_operand.hbm [shape: bf16[128,384], index: 3, kind: input, shape index: {}]
  %s4 = inlined_call_operand.vmem [shape: f32[1,384], index: 4, kind: input, shape index: {}]
  %s5 = inlined_call_operand.vmem [shape: f32[1,128], index: 5, kind: input, shape index: {}]
  %s6 = inlined_call_operand.hbm [shape: bf16[128,128], index: 6, kind: input, shape index: {}]
  %s7 = inlined_call_operand.vmem [shape: f32[1,128], index: 7, kind: input, shape index: {}]
  %s8 = inlined_call_operand.hbm [shape: f32[8,128], index: 8, kind: output, shape index: {0}]
  %s9 = inlined_call_operand.hbm [shape: f32[1,128], index: 9, kind: output, shape index: {1}]
  %10 = xla_tuple %s8, %s9
  %s11 = sld [smem:[#allocation0]]
  $region66: #{tpu_custom_call.1} parent=0
    _
  %s13 = ssub.s32 1, %s11
  %s14 = scalar_select 0, %s13, %s11
  $region1: #{tpu_custom_call.1} parent=0
    #allocation4 [shape = 'u8[2048]{0}', space=vmem, size = 0x800, scoped, tag = 'input window, operand 0, single buffered']
    #allocation5 [shape = 's32[1]{0}', space=sflag, size = 0x4, scoped, tag = 'scoped memory for tpu_custom_call.1']
    #allocation6 [shape = 's32[1]{0}', space=sflag, size = 0x4, scoped, tag = 'scoped memory for tpu_custom_call.1']
    #allocation7 [shape = 'u8[24576]{0}', space=vmem, size = 0x6000, scoped, tag = 'input window, operand 2, single buffered']
    #allocation8 [shape = 's32[1]{0}', space=sflag, size = 0x4, scoped, tag = 'scoped memory for tpu_custom_call.1']
    #allocation9 [shape = 'u8[98304]{0}', space=vmem, size = 0x18000, scoped, tag = 'input window, operand 3, single buffered']
    #allocation10 [shape = 'u8[32768]{0}', space=vmem, size = 0x8000, scoped, tag = 'input window, operand 6, single buffered']
    #allocation11 [shape = 's32[1]{0}', space=sflag, size = 0x4, scoped, tag = 'scoped memory for tpu_custom_call.1']
    #allocation12 [shape = 'u8[4096]{0}', space=vmem, size = 0x1000, scoped, tag = 'output window, operand 0, single buffered']
    #allocation13 [shape = 'u8[512]{0}', space=vmem, size = 0x400, scoped, tag = 'output window, operand 1, single buffered']
    #allocation14 [shape = 's32[1]{0}', space=sflag, size = 0x4, scoped, tag = 'scoped memory for tpu_custom_call.1']
    %15 = vsyncpa [#allocation5], 0
    %16 = vsyncpa [#allocation8], 0
    %17 = vsyncpa [#allocation11], 0
    %18 = vsyncpa [#allocation6], 0
    %19 = vsyncpa [#allocation14], 0
    // Predicated region
    $region2: #{tpu_custom_call.1} parent=1 // pred_check
      _
    $region3: #{tpu_custom_call.1} parent=1 // pred_check_branch
      %21 = sbr.rel (0) target = $region5
    $region4: #{tpu_custom_call.1} parent=1 // pred_region
      %s23 = ssub.s32 64, 64
      %24 = vsyncadd [#allocation5], %s23
      %s26 = sshll.u32 [#allocation4], 4
      %s27 = int_to_ptr.vmem [resolvable:$true] %s26
      %29 = dma.hbm_to_vmem [thread:$0]  %s0, 64, %s27, [#allocation5]
    $region5: #{tpu_custom_call.1} parent=1 // pred_fallthru
      _
    // Predicated region
    $region6: #{tpu_custom_call.1} parent=1 // pred_check
      _
    $region7: #{tpu_custom_call.1} parent=1 // pred_check_branch
      %31 = sbr.rel (0) target = $region9
    $region8: #{tpu_custom_call.1} parent=1 // pred_region
      _
    $region9: #{tpu_custom_call.1} parent=1 // pred_fallthru
      _
    // Predicated region
    $region10: #{tpu_custom_call.1} parent=1 // pred_check
      _
    $region11: #{tpu_custom_call.1} parent=1 // pred_check_branch
      %33 = sbr.rel (0) target = $region13
    $region12: #{tpu_custom_call.1} parent=1 // pred_region
      %s35 = ssub.s32 768, 768
      %36 = vsyncadd [#allocation8], %s35
      %s37 = sshll.u32 [#allocation7], 4
      %s38 = int_to_ptr.vmem [resolvable:$true] %s37
      %43 = dma.hbm_to_vmem [thread:$0]  %s2, 768, %s38, [#allocation8], 192, 192, 12
    $region13: #{tpu_custom_call.1} parent=1 // pred_fallthru
      _
    // Predicated region
    $region14: #{tpu_custom_call.1} parent=1 // pred_check
      _
    $region15: #{tpu_custom_call.1} parent=1 // pred_check_branch
      %45 = sbr.rel (0) target = $region17
    $region16: #{tpu_custom_call.1} parent=1 // pred_region
      %s47 = ssub.s32 3072, 3072
      %48 = vsyncadd [#allocation8], %s47
      %s49 = sshll.u32 [#allocation9], 4
      %s50 = int_to_ptr.vmem [resolvable:$true] %s49
      %55 = dma.hbm_to_vmem [thread:$0]  %s3, 3072, %s50, [#allocation8], 192, 192, 12
    $region17: #{tpu_custom_call.1} parent=1 // pred_fallthru
      _
    // Predicated region
    $region18: #{tpu_custom_call.1} parent=1 // pred_check
      _
    $region19: #{tpu_custom_call.1} parent=1 // pred_check_branch
      %57 = sbr.rel (0) target = $region21
    $region20: #{tpu_custom_call.1} parent=1 // pred_region
      _
    $region21: #{tpu_custom_call.1} parent=1 // pred_fallthru
      _
    // Predicated region
    $region22: #{tpu_custom_call.1} parent=1 // pred_check
      _
    $region23: #{tpu_custom_call.1} parent=1 // pred_check_branch
      %59 = sbr.rel (0) target = $region25
    $region24: #{tpu_custom_call.1} parent=1 // pred_region
      _
    $region25: #{tpu_custom_call.1} parent=1 // pred_fallthru
      _
    // Predicated region
    $region26: #{tpu_custom_call.1} parent=1 // pred_check
      _
    $region27: #{tpu_custom_call.1} parent=1 // pred_check_branch
      %61 = sbr.rel (0) target = $region29
    $region28: #{tpu_custom_call.1} parent=1 // pred_region
      %s63 = ssub.s32 1024, 1024
      %64 = vsyncadd [#allocation11], %s63
      %s65 = sshll.u32 [#allocation10], 4
      %s66 = int_to_ptr.vmem [resolvable:$true] %s65
      %71 = dma.hbm_to_vmem [thread:$0]  %s6, 1024, %s66, [#allocation11], 64, 64, 4
    $region29: #{tpu_custom_call.1} parent=1 // pred_fallthru
      _
    // Predicated region
    $region30: #{tpu_custom_call.1} parent=1 // pred_check
      _
    $region31: #{tpu_custom_call.1} parent=1 // pred_check_branch
      %73 = sbr.rel (0) target = $region33
    $region32: #{tpu_custom_call.1} parent=1 // pred_region
      _
    $region33: #{tpu_custom_call.1} parent=1 // pred_fallthru
      _
    // Predicated region
    $region34: #{tpu_custom_call.1} parent=1 // pred_check
      _
    $region35: #{tpu_custom_call.1} parent=1 // pred_check_branch
      %75 = sbr.rel (0) target = $region37
    $region36: #{tpu_custom_call.1} parent=1 // pred_region
      %76 = dma.done [#allocation5], 64
    $region37: #{tpu_custom_call.1} parent=1 // pred_fallthru
      _
    // Predicated region
    $region38: #{tpu_custom_call.1} parent=1 // pred_check
      _
    $region39: #{tpu_custom_call.1} parent=1 // pred_check_branch
      %78 = sbr.rel (0) target = $region41
    $region40: #{tpu_custom_call.1} parent=1 // pred_region
      %79 = dma.done [#allocation8], 768
    $region41: #{tpu_custom_call.1} parent=1 // pred_fallthru
      _
    // Predicated region
    $region42: #{tpu_custom_call.1} parent=1 // pred_check
      _
    $region43: #{tpu_custom_call.1} parent=1 // pred_check_branch
      %81 = sbr.rel (0) target = $region45
    $region44: #{tpu_custom_call.1} parent=1 // pred_region
      %82 = dma.done [#allocation8], 3072
    $region45: #{tpu_custom_call.1} parent=1 // pred_fallthru
      _
    // Predicated region
    $region46: #{tpu_custom_call.1} parent=1 // pred_check
      _
    $region47: #{tpu_custom_call.1} parent=1 // pred_check_branch
      %84 = sbr.rel (0) target = $region49
    $region48: #{tpu_custom_call.1} parent=1 // pred_region
      %85 = dma.done [#allocation11], 1024
    $region49: #{tpu_custom_call.1} parent=1 // pred_fallthru
      _
    %v87 = vld [vmem:[#allocation4] sm:$0xf]
    %v88 = vld [vmem:[#allocation7] sm:$0xff]
    %v89 = vld [vmem:[#allocation7 + $0x8] sm:$0xf]
    %v90 = vld [vmem:[#allocation7 + $0xc] sm:$0xff]
    %v91 = vld [vmem:[#allocation7 + $0x14] sm:$0xf]
    %v92 = vld [vmem:[#allocation7 + $0x18] sm:$0xff]
    %v93 = vld [vmem:[#allocation7 + $0x20] sm:$0xf]
    %v94 = vld [vmem:[#allocation7 + $0x24] sm:$0xff]
    %v95 = vld [vmem:[#allocation7 + $0x2c] sm:$0xf]
    %v96 = vld [vmem:[%s4] sm:$0x7]
    %v98 = vlaneseq
    %v99 = vshrl.u32 %v98, 7
    %v100 = vsub.s32 0, %v99
    %v101 = vrot.slane %v96, %v100
    %v102 = vlaneseq
    %v103 = vshrl.u32 %v102, 7
    %v104 = vsub.s32 1, %v103
    %v105 = vrot.slane %v96, %v104
    %v106 = vlaneseq
    %v107 = vshrl.u32 %v106, 7
    %v108 = vsub.s32 2, %v107
    %v109 = vrot.slane %v96, %v108
    %v121 = vunpack.c.l.b16 %v88
    %v122 = vunpack.c.h.b16 %v88
    %v123 = vunpack.c.l.b16 %v89
    %v124 = vunpack.c.l.b16 %v90
    %v125 = vunpack.c.h.b16 %v90
    %v126 = vunpack.c.l.b16 %v91
    %v127 = vunpack.c.l.b16 %v92
    %v128 = vunpack.c.h.b16 %v92
    %v129 = vunpack.c.l.b16 %v93
    %v130 = vunpack.c.l.b16 %v94
    %v131 = vunpack.c.h.b16 %v94
    %v132 = vunpack.c.l.b16 %v95
    %v133 = vpack.c.b16 %v124, %v121
    %v134 = vpack.c.b16 %v125, %v122
    %v135 = vpack.c.b16 %v126, %v123
    %v136 = vpack.c.b16 %v130, %v127
    %v137 = vpack.c.b16 %v131, %v128
    %v138 = vpack.c.b16 %v132, %v129
    %vm145 = vcmask 261120
    %v147 = vsel %vm145, %v87, 0
    %149 = vmatprep.subr.bf16.mxu0 %v134
    %150 = vmatpush1.bf16.msra.mxu0 %v133
    %151 = vmatprep.subr.bf16.mxu0 %v137
    %152 = vmatpush1.bf16.msra.mxu0 %v136
    %153 = vmatprep.subr.bf16.mxu0 0
    %154 = vmatpush1.bf16.msra.mxu0 0
    %155 = vmatprep.subr.bf16.mxu0 0
    %156 = vmatpush1.bf16.msra.mxu0 0
    %157 = vmatprep.subr.bf16.mxu0 0
    %158 = vmatpush1.bf16.msra.mxu0 0
    %159 = vmatprep.subr.bf16.mxu0 0
    %160 = vmatpush1.bf16.msra.mxu0 0
    %161 = vmatprep.subr.bf16.mxu0 0
    %162 = vmatpush1.bf16.msra.mxu0 0
    %163 = vmatprep.subr.bf16.mxu0 0
    %164 = vmatpush1.bf16.msra.mxu0 0
    %165 = vmatprep.subr.bf16.mxu0 0
    %166 = vmatpush1.bf16.msra.mxu0 0
    %167 = vmatprep.subr.bf16.mxu0 0
    %168 = vmatpush1.bf16.msra.mxu0 0
    %169 = vmatprep.subr.bf16.mxu0 0
    %170 = vmatpush1.bf16.msra.mxu0 0
    %171 = vmatprep.subr.bf16.mxu0 0
    %172 = vmatpush1.bf16.msra.mxu0 0
    %173 = vmatprep.subr.bf16.mxu0 0
    %174 = vmatpush1.bf16.msra.mxu0 0
    %175 = vmatprep.subr.bf16.mxu0 0
    %176 = vmatpush1.bf16.msra.mxu0 0
    %177 = vmatprep.subr.bf16.mxu0 0
    %178 = vmatpush1.bf16.msra.mxu0 0
    %179 = vmatprep.subr.bf16.mxu0 0
    %180 = vmatpush1.bf16.msra.mxu0 0
    %181 = vmatprep.mubr.bf16.mxu0 0
    %182 = vmatmul.mubr.bf16.gmra.mrb[0].mxu0 %v147
    %v183 = vpop.f32.mrb[0].mxu0
    %v184 = vadd.f32 %v101, %v183
    %v185 = vpop.f32.mrb[0].mxu0
    %v186 = vadd.f32 %v105, %v185
    %v187 = vpop.f32.mrb[0].mxu0
    %v188 = vpop.f32.mrb[0].mxu0
    %189 = vdwg.mxu0
    %190 = vmatprep.subr.bf16.mxu0 0
    %191 = vmatpush1.bf16.msra.mxu0 %v135
    %192 = vmatprep.subr.bf16.mxu0 0
    %193 = vmatpush1.bf16.msra.mxu0 %v138
    %194 = vmatprep.subr.bf16.mxu0 0
    %195 = vmatpush1.bf16.msra.mxu0 0
    %196 = vmatprep.subr.bf16.mxu0 0
    %197 = vmatpush1.bf16.msra.mxu0 0
    %198 = vmatprep.subr.bf16.mxu0 0
    %199 = vmatpush1.bf16.msra.mxu0 0
    %200 = vmatprep.subr.bf16.mxu0 0
    %201 = vmatpush1.bf16.msra.mxu0 0
    %202 = vmatprep.subr.bf16.mxu0 0
    %203 = vmatpush1.bf16.msra.mxu0 0
    %204 = vmatprep.subr.bf16.mxu0 0
    %205 = vmatpush1.bf16.msra.mxu0 0
    %206 = vmatprep.subr.bf16.mxu0 0
    %207 = vmatpush1.bf16.msra.mxu0 0
    %208 = vmatprep.subr.bf16.mxu0 0
    %209 = vmatpush1.bf16.msra.mxu0 0
    %210 = vmatprep.subr.bf16.mxu0 0
    %211 = vmatpush1.bf16.msra.mxu0 0
    %212 = vmatprep.subr.bf16.mxu0 0
    %213 = vmatpush1.bf16.msra.mxu0 0
    %214 = vmatprep.subr.bf16.mxu0 0
    %215 = vmatpush1.bf16.msra.mxu0 0
    %216 = vmatprep.subr.bf16.mxu0 0
    %217 = vmatpush1.bf16.msra.mxu0 0
    %218 = vmatprep.subr.bf16.mxu0 0
    %219 = vmatpush1.bf16.msra.mxu0 0
    %220 = vmatprep.subr.bf16.mxu0 0
    %221 = vmatpush1.bf16.msra.mxu0 0
    %222 = vmatprep.mubr.bf16.mxu0 0
    %223 = vmatmul.mubr.bf16.gmra.mrb[0].mxu0 %v147
    %v224 = vpop.f32.mrb[0].mxu0
    %v225 = vadd.f32 %v109, %v224
    %v226 = vpop.f32.mrb[0].mxu0
    %v227 = vpop.f32.mrb[0].mxu0
    %v228 = vpop.f32.mrb[0].mxu0
    %229 = vdwg.mxu0
    %230 = vst [vmem:[#allocation2] sm:$0xff] %v184
    %231 = vst [vmem:[#allocation2 + $0x8] sm:$0xff] %v186
    %232 = vst [vmem:[#allocation2 + $0x10] sm:$0xff] %v225
    %233 = vst [vmem:[#allocation3] sm:$0xff] 0.0
    %v234 = vld [vmem:[%s1] sm:$0x1]
    %v235 = vld [vmem:[#allocation2] ss:$8 sm:$0x7]
    %v236 = vpack.c.bf16 %v234, %v234
    %v237 = vld [vmem:[#allocation9] sm:$0xff]
    %v238 = vld [vmem:[#allocation9 + $0x8] sm:$0xf]
    %v239 = vld [vmem:[#allocation9 + $0xc] sm:$0xff]
    %v240 = vld [vmem:[#allocation9 + $0x14] sm:$0xf]
    %v241 = vld [vmem:[#allocation9 + $0x18] sm:$0xff]
    %v242 = vld [vmem:[#allocation9 + $0x20] sm:$0xf]
    %v243 = vld [vmem:[#allocation9 + $0x24] sm:$0xff]
    %v244 = vld [vmem:[#allocation9 + $0x2c] sm:$0xf]
    %v245 = vld [vmem:[#allocation9 + $0x30] sm:$0xff]
    %v246 = vld [vmem:[#allocation9 + $0x38] sm:$0xf]
    %v247 = vld [vmem:[#allocation9 + $0x3c] sm:$0xff]
    %v248 = vld [vmem:[#allocation9 + $0x44] sm:$0xf]
    %v249 = vld [vmem:[#allocation9 + $0x48] sm:$0xff]
    %v250 = vld [vmem:[#allocation9 + $0x50] sm:$0xf]
    %v251 = vld [vmem:[#allocation9 + $0x54] sm:$0xff]
    %v252 = vld [vmem:[#allocation9 + $0x5c] sm:$0xf]
    %v253 = vld [vmem:[#allocation9 + $0x60] sm:$0xff]
    %v254 = vld [vmem:[#allocation9 + $0x68] sm:$0xf]
    %v255 = vld [vmem:[#allocation9 + $0x6c] sm:$0xff]
    %v256 = vld [vmem:[#allocation9 + $0x74] sm:$0xf]
    %v257 = vld [vmem:[#allocation9 + $0x78] sm:$0xff]
    %v258 = vld [vmem:[#allocation9 + $0x80] sm:$0xf]
    %v259 = vld [vmem:[#allocation9 + $0x84] sm:$0xff]
    %v260 = vld [vmem:[#allocation9 + $0x8c] sm:$0xf]
    %v261 = vld [vmem:[#allocation9 + $0x90] sm:$0xff]
    %v262 = vld [vmem:[#allocation9 + $0x98] sm:$0xf]
    %v263 = vld [vmem:[#allocation9 + $0x9c] sm:$0xff]
    %v264 = vld [vmem:[#allocation9 + $0xa4] sm:$0xf]
    %v265 = vld [vmem:[#allocation9 + $0xa8] sm:$0xff]
    %v266 = vld [vmem:[#allocation9 + $0xb0] sm:$0xf]
    %v267 = vld [vmem:[#allocation9 + $0xb4] sm:$0xff]
    %v268 = vld [vmem:[#allocation9 + $0xbc] sm:$0xf]
    %v301 = vunpack.c.l.b16 %v237
    %v302 = vunpack.c.h.b16 %v237
    %v303 = vunpack.c.l.b16 %v238
    %v304 = vunpack.c.l.b16 %v239
    %v305 = vunpack.c.h.b16 %v239
    %v306 = vunpack.c.l.b16 %v240
    %v307 = vunpack.c.l.b16 %v241
    %v308 = vunpack.c.h.b16 %v241
    %v309 = vunpack.c.l.b16 %v242
    %v310 = vunpack.c.l.b16 %v243
    %v311 = vunpack.c.h.b16 %v243
    %v312 = vunpack.c.l.b16 %v244
    %v313 = vunpack.c.l.b16 %v245
    %v314 = vunpack.c.h.b16 %v245
    %v315 = vunpack.c.l.b16 %v246
    %v316 = vunpack.c.l.b16 %v247
    %v317 = vunpack.c.h.b16 %v247
    %v318 = vunpack.c.l.b16 %v248
    %v319 = vunpack.c.l.b16 %v249
    %v320 = vunpack.c.h.b16 %v249
    %v321 = vunpack.c.l.b16 %v250
    %v322 = vunpack.c.l.b16 %v251
    %v323 = vunpack.c.h.b16 %v251
    %v324 = vunpack.c.l.b16 %v252
    %v325 = vunpack.c.l.b16 %v253
    %v326 = vunpack.c.h.b16 %v253
    %v327 = vunpack.c.l.b16 %v254
    %v328 = vunpack.c.l.b16 %v255
    %v329 = vunpack.c.h.b16 %v255
    %v330 = vunpack.c.l.b16 %v256
    %v331 = vunpack.c.l.b16 %v257
    %v332 = vunpack.c.h.b16 %v257
    %v333 = vunpack.c.l.b16 %v258
    %v334 = vunpack.c.l.b16 %v259
    %v335 = vunpack.c.h.b16 %v259
    %v336 = vunpack.c.l.b16 %v260
    %v337 = vunpack.c.l.b16 %v261
    %v338 = vunpack.c.h.b16 %v261
    %v339 = vunpack.c.l.b16 %v262
    %v340 = vunpack.c.l.b16 %v263
    %v341 = vunpack.c.h.b16 %v263
    %v342 = vunpack.c.l.b16 %v264
    %v343 = vunpack.c.l.b16 %v265
    %v344 = vunpack.c.h.b16 %v265
    %v345 = vunpack.c.l.b16 %v266
    %v346 = vunpack.c.l.b16 %v267
    %v347 = vunpack.c.h.b16 %v267
    %v348 = vunpack.c.l.b16 %v268
    %v349 = vpack.c.b16 %v304, %v301
    %v350 = vpack.c.b16 %v305, %v302
    %v351 = vpack.c.b16 %v306, %v303
    %v352 = vpack.c.b16 %v310, %v307
    %v353 = vpack.c.b16 %v311, %v308
    %v354 = vpack.c.b16 %v312, %v309
    %v355 = vpack.c.b16 %v316, %v313
    %v356 = vpack.c.b16 %v317, %v314
    %v357 = vpack.c.b16 %v318, %v315
    %v358 = vpack.c.b16 %v322, %v319
    %v359 = vpack.c.b16 %v323, %v320
    %v360 = vpack.c.b16 %v324, %v321
    %v361 = vpack.c.b16 %v328, %v325
    %v362 = vpack.c.b16 %v329, %v326
    %v363 = vpack.c.b16 %v330, %v327
    %v364 = vpack.c.b16 %v334, %v331
    %v365 = vpack.c.b16 %v335, %v332
    %v366 = vpack.c.b16 %v336, %v333
    %v367 = vpack.c.b16 %v340, %v337
    %v368 = vpack.c.b16 %v341, %v338
    %v369 = vpack.c.b16 %v342, %v339
    %v370 = vpack.c.b16 %v346, %v343
    %v371 = vpack.c.b16 %v347, %v344
    %v372 = vpack.c.b16 %v348, %v345
    %397 = vmatprep.subr.bf16.mxu0 %v350
    %398 = vmatpush1.bf16.msra.mxu0 %v349
    %399 = vmatprep.subr.bf16.mxu0 %v353
    %400 = vmatpush1.bf16.msra.mxu0 %v352
    %401 = vmatprep.subr.bf16.mxu0 %v356
    %402 = vmatpush1.bf16.msra.mxu0 %v355
    %403 = vmatprep.subr.bf16.mxu0 %v359
    %404 = vmatpush1.bf16.msra.mxu0 %v358
    %405 = vmatprep.subr.bf16.mxu0 %v362
    %406 = vmatpush1.bf16.msra.mxu0 %v361
    %407 = vmatprep.subr.bf16.mxu0 %v365
    %408 = vmatpush1.bf16.msra.mxu0 %v364
    %409 = vmatprep.subr.bf16.mxu0 %v368
    %410 = vmatpush1.bf16.msra.mxu0 %v367
    %411 = vmatprep.subr.bf16.mxu0 %v371
    %412 = vmatpush1.bf16.msra.mxu0 %v370
    %413 = vmatprep.subr.bf16.mxu0 0
    %414 = vmatpush1.bf16.msra.mxu0 0
    %415 = vmatprep.subr.bf16.mxu0 0
    %416 = vmatpush1.bf16.msra.mxu0 0
    %417 = vmatprep.subr.bf16.mxu0 0
    %418 = vmatpush1.bf16.msra.mxu0 0
    %419 = vmatprep.subr.bf16.mxu0 0
    %420 = vmatpush1.bf16.msra.mxu0 0
    %421 = vmatprep.subr.bf16.mxu0 0
    %422 = vmatpush1.bf16.msra.mxu0 0
    %423 = vmatprep.subr.bf16.mxu0 0
    %424 = vmatpush1.bf16.msra.mxu0 0
    %425 = vmatprep.subr.bf16.mxu0 0
    %426 = vmatpush1.bf16.msra.mxu0 0
    %427 = vmatprep.subr.bf16.mxu0 0
    %428 = vmatpush1.bf16.msra.mxu0 0
    %429 = vmatprep.mubr.bf16.mxu0 0
    %430 = vmatmul.mubr.bf16.gmra.mrb[0].mxu0 %v236
    %v431 = vpop.f32.mrb[0].mxu0
    %v432 = vadd.f32 0.0, %v431
    %v433 = vpop.f32.mrb[0].mxu0
    %v434 = vadd.f32 0.0, %v433
    %v435 = vpop.f32.mrb[0].mxu0
    %v436 = vpop.f32.mrb[0].mxu0
    %437 = vdwg.mxu0
    %438 = vmatprep.subr.bf16.mxu0 0
    %439 = vmatpush1.bf16.msra.mxu0 %v351
    %440 = vmatprep.subr.bf16.mxu0 0
    %441 = vmatpush1.bf16.msra.mxu0 %v354
    %442 = vmatprep.subr.bf16.mxu0 0
    %443 = vmatpush1.bf16.msra.mxu0 %v357
    %444 = vmatprep.subr.bf16.mxu0 0
    %445 = vmatpush1.bf16.msra.mxu0 %v360
    %446 = vmatprep.subr.bf16.mxu0 0
    %447 = vmatpush1.bf16.msra.mxu0 %v363
    %448 = vmatprep.subr.bf16.mxu0 0
    %449 = vmatpush1.bf16.msra.mxu0 %v366
    %450 = vmatprep.subr.bf16.mxu0 0
    %451 = vmatpush1.bf16.msra.mxu0 %v369
    %452 = vmatprep.subr.bf16.mxu0 0
    %453 = vmatpush1.bf16.msra.mxu0 %v372
    %454 = vmatprep.subr.bf16.mxu0 0
    %455 = vmatpush1.bf16.msra.mxu0 0
    %456 = vmatprep.subr.bf16.mxu0 0
    %457 = vmatpush1.bf16.msra.mxu0 0
    %458 = vmatprep.subr.bf16.mxu0 0
    %459 = vmatpush1.bf16.msra.mxu0 0
    %460 = vmatprep.subr.bf16.mxu0 0
    %461 = vmatpush1.bf16.msra.mxu0 0
    %462 = vmatprep.subr.bf16.mxu0 0
    %463 = vmatpush1.bf16.msra.mxu0 0
    %464 = vmatprep.subr.bf16.mxu0 0
    %465 = vmatpush1.bf16.msra.mxu0 0
    %466 = vmatprep.subr.bf16.mxu0 0
    %467 = vmatpush1.bf16.msra.mxu0 0
    %468 = vmatprep.subr.bf16.mxu0 0
    %469 = vmatpush1.bf16.msra.mxu0 0
    %470 = vmatprep.mubr.bf16.mxu0 0
    %471 = vmatmul.mubr.bf16.gmra.mrb[0].mxu0 %v236
    %v472 = vpop.f32.mrb[0].mxu0
    %v473 = vadd.f32 0.0, %v472
    %v474 = vpop.f32.mrb[0].mxu0
    %v475 = vpop.f32.mrb[0].mxu0
    %v476 = vpop.f32.mrb[0].mxu0
    %477 = vdwg.mxu0
    %v478 = vadd.f32 %v235, %v432
    %v479 = vxor.u32 %v478, 2147483648
    %v480 = vmul.f32 %v479, 1.442695
    %v481 = vpow.pop %v480
    %v482 = vadd.f32 %v481, 1.0
    %v483 = vrcp.pop %v482
    %v484 = vmul.f32 1.0, %v483
    %v486 = vrot.slane %v235, 1
    %v488 = vadd.f32 %v486, %v434
    %v489 = vxor.u32 %v488, 2147483648
    %v490 = vmul.f32 %v489, 1.442695
    %v491 = vpow.pop %v490
    %v492 = vadd.f32 %v491, 1.0
    %v493 = vrcp.pop %v492
    %v494 = vmul.f32 1.0, %v493
    %v495 = vld [vmem:[%s5] sm:$0x1]
    %v496 = vadd.f32 %v473, %v495
    %v497 = vmul.f32 %v484, %v496
    %v498 = vrot.slane %v235, 2
    %v500 = vadd.f32 %v498, %v497
    %v501 = vtanh.pop %v500
    %v502 = vsub.f32 1.0, %v494
    %v503 = vmul.f32 %v502, %v501
    %v504 = vmul.f32 %v494, %v234
    %v505 = vadd.f32 %v503, %v504
    %506 = vst [vmem:[#allocation3] sm:$0x1] %v505
    %s507 = scalar_lea.vmem [#allocation2], 1
    %v508 = vld [vmem:[%s507] ss:$8 sm:$0x7]
    %v509 = vpack.c.bf16 %v505, %v505
    %v510 = vld [vmem:[#allocation9] sm:$0xff]
    %v511 = vld [vmem:[#allocation9 + $0x8] sm:$0xf]
    %v512 = vld [vmem:[#allocation9 + $0xc] sm:$0xff]
    %v513 = vld [vmem:[#allocation9 + $0x14] sm:$0xf]
    %v514 = vld [vmem:[#allocation9 + $0x18] sm:$0xff]
    %v515 = vld [vmem:[#allocation9 + $0x20] sm:$0xf]
    %v516 = vld [vmem:[#allocation9 + $0x24] sm:$0xff]
    %v517 = vld [vmem:[#allocation9 + $0x2c] sm:$0xf]
    %v518 = vld [vmem:[#allocation9 + $0x30] sm:$0xff]
    %v519 = vld [vmem:[#allocation9 + $0x38] sm:$0xf]
    %v520 = vld [vmem:[#allocation9 + $0x3c] sm:$0xff]
    %v521 = vld [vmem:[#allocation9 + $0x44] sm:$0xf]
    %v522 = vld [vmem:[#allocation9 + $0x48] sm:$0xff]
    %v523 = vld [vmem:[#allocation9 + $0x50] sm:$0xf]
    %v524 = vld [vmem:[#allocation9 + $0x54] sm:$0xff]
    %v525 = vld [vmem:[#allocation9 + $0x5c] sm:$0xf]
    %v526 = vld [vmem:[#allocation9 + $0x60] sm:$0xff]
    %v527 = vld [vmem:[#allocation9 + $0x68] sm:$0xf]
    %v528 = vld [vmem:[#allocation9 + $0x6c] sm:$0xff]
    %v529 = vld [vmem:[#allocation9 + $0x74] sm:$0xf]
    %v530 = vld [vmem:[#allocation9 + $0x78] sm:$0xff]
    %v531 = vld [vmem:[#allocation9 + $0x80] sm:$0xf]
    %v532 = vld [vmem:[#allocation9 + $0x84] sm:$0xff]
    %v533 = vld [vmem:[#allocation9 + $0x8c] sm:$0xf]
    %v534 = vld [vmem:[#allocation9 + $0x90] sm:$0xff]
    %v535 = vld [vmem:[#allocation9 + $0x98] sm:$0xf]
    %v536 = vld [vmem:[#allocation9 + $0x9c] sm:$0xff]
    %v537 = vld [vmem:[#allocation9 + $0xa4] sm:$0xf]
    %v538 = vld [vmem:[#allocation9 + $0xa8] sm:$0xff]
    %v539 = vld [vmem:[#allocation9 + $0xb0] sm:$0xf]
    %v540 = vld [vmem:[#allocation9 + $0xb4] sm:$0xff]
    %v541 = vld [vmem:[#allocation9 + $0xbc] sm:$0xf]
    %v574 = vunpack.c.l.b16 %v510
    %v575 = vunpack.c.h.b16 %v510
    %v576 = vunpack.c.l.b16 %v511
    %v577 = vunpack.c.l.b16 %v512
    %v578 = vunpack.c.h.b16 %v512
    %v579 = vunpack.c.l.b16 %v513
    %v580 = vunpack.c.l.b16 %v514
    %v581 = vunpack.c.h.b16 %v514
    %v582 = vunpack.c.l.b16 %v515
    %v583 = vunpack.c.l.b16 %v516
    %v584 = vunpack.c.h.b16 %v516
    %v585 = vunpack.c.l.b16 %v517
    %v586 = vunpack.c.l.b16 %v518
    %v587 = vunpack.c.h.b16 %v518
    %v588 = vunpack.c.l.b16 %v519
    %v589 = vunpack.c.l.b16 %v520
    %v590 = vunpack.c.h.b16 %v520
    %v591 = vunpack.c.l.b16 %v521
    %v592 = vunpack.c.l.b16 %v522
    %v593 = vunpack.c.h.b16 %v522
    %v594 = vunpack.c.l.b16 %v523
    %v595 = vunpack.c.l.b16 %v524
    %v596 = vunpack.c.h.b16 %v524
    %v597 = vunpack.c.l.b16 %v525
    %v598 = vunpack.c.l.b16 %v526
    %v599 = vunpack.c.h.b16 %v526
    %v600 = vunpack.c.l.b16 %v527
    %v601 = vunpack.c.l.b16 %v528
    %v602 = vunpack.c.h.b16 %v528
    %v603 = vunpack.c.l.b16 %v529
    %v604 = vunpack.c.l.b16 %v530
    %v605 = vunpack.c.h.b16 %v530
    %v606 = vunpack.c.l.b16 %v531
    %v607 = vunpack.c.l.b16 %v532
    %v608 = vunpack.c.h.b16 %v532
    %v609 = vunpack.c.l.b16 %v533
    %v610 = vunpack.c.l.b16 %v534
    %v611 = vunpack.c.h.b16 %v534
    %v612 = vunpack.c.l.b16 %v535
    %v613 = vunpack.c.l.b16 %v536
    %v614 = vunpack.c.h.b16 %v536
    %v615 = vunpack.c.l.b16 %v537
    %v616 = vunpack.c.l.b16 %v538
    %v617 = vunpack.c.h.b16 %v538
    %v618 = vunpack.c.l.b16 %v539
    %v619 = vunpack.c.l.b16 %v540
    %v620 = vunpack.c.h.b16 %v540
    %v621 = vunpack.c.l.b16 %v541
    %v622 = vpack.c.b16 %v577, %v574
    %v623 = vpack.c.b16 %v578, %v575
    %v624 = vpack.c.b16 %v579, %v576
    %v625 = vpack.c.b16 %v583, %v580
    %v626 = vpack.c.b16 %v584, %v581
    %v627 = vpack.c.b16 %v585, %v582
    %v628 = vpack.c.b16 %v589, %v586
    %v629 = vpack.c.b16 %v590, %v587
    %v630 = vpack.c.b16 %v591, %v588
    %v631 = vpack.c.b16 %v595, %v592
    %v632 = vpack.c.b16 %v596, %v593
    %v633 = vpack.c.b16 %v597, %v594
    %v634 = vpack.c.b16 %v601, %v598
    %v635 = vpack.c.b16 %v602, %v599
    %v636 = vpack.c.b16 %v603, %v600
    %v637 = vpack.c.b16 %v607, %v604
    %v638 = vpack.c.b16 %v608, %v605
    %v639 = vpack.c.b16 %v609, %v606
    %v640 = vpack.c.b16 %v613, %v610
    %v641 = vpack.c.b16 %v614, %v611
    %v642 = vpack.c.b16 %v615, %v612
    %v643 = vpack.c.b16 %v619, %v616
    %v644 = vpack.c.b16 %v620, %v617
    %v645 = vpack.c.b16 %v621, %v618
    %670 = vmatprep.subr.bf16.mxu0 %v623
    %671 = vmatpush1.bf16.msra.mxu0 %v622
    %672 = vmatprep.subr.bf16.mxu0 %v626
    %673 = vmatpush1.bf16.msra.mxu0 %v625
    %674 = vmatprep.subr.bf16.mxu0 %v629
    %675 = vmatpush1.bf16.msra.mxu0 %v628
    %676 = vmatprep.subr.bf16.mxu0 %v632
    %677 = vmatpush1.bf16.msra.mxu0 %v631
    %678 = vmatprep.subr.bf16.mxu0 %v635
    %679 = vmatpush1.bf16.msra.mxu0 %v634
    %680 = vmatprep.subr.bf16.mxu0 %v638
    %681 = vmatpush1.bf16.msra.mxu0 %v637
    %682 = vmatprep.subr.bf16.mxu0 %v641
    %683 = vmatpush1.bf16.msra.mxu0 %v640
    %684 = vmatprep.subr.bf16.mxu0 %v644
    %685 = vmatpush1.bf16.msra.mxu0 %v643
    %686 = vmatprep.subr.bf16.mxu0 0
    %687 = vmatpush1.bf16.msra.mxu0 0
    %688 = vmatprep.subr.bf16.mxu0 0
    %689 = vmatpush1.bf16.msra.mxu0 0
    %690 = vmatprep.subr.bf16.mxu0 0
    %691 = vmatpush1.bf16.msra.mxu0 0
    %692 = vmatprep.subr.bf16.mxu0 0
    %693 = vmatpush1.bf16.msra.mxu0 0
    %694 = vmatprep.subr.bf16.mxu0 0
    %695 = vmatpush1.bf16.msra.mxu0 0
    %696 = vmatprep.subr.bf16.mxu0 0
    %697 = vmatpush1.bf16.msra.mxu0 0
    %698 = vmatprep.subr.bf16.mxu0 0
    %699 = vmatpush1.bf16.msra.mxu0 0
    %700 = vmatprep.subr.bf16.mxu0 0
    %701 = vmatpush1.bf16.msra.mxu0 0
    %702 = vmatprep.mubr.bf16.mxu0 0
    %703 = vmatmul.mubr.bf16.gmra.mrb[0].mxu0 %v509
    %v704 = vpop.f32.mrb[0].mxu0
    %v705 = vadd.f32 0.0, %v704
    %v706 = vpop.f32.mrb[0].mxu0
    %v707 = vadd.f32 0.0, %v706
    %v708 = vpop.f32.mrb[0].mxu0
    %v709 = vpop.f32.mrb[0].mxu0
    %710 = vdwg.mxu0
    %711 = vmatprep.subr.bf16.mxu0 0
    %712 = vmatpush1.bf16.msra.mxu0 %v624
    %713 = vmatprep.subr.bf16.mxu0 0
    %714 = vmatpush1.bf16.msra.mxu0 %v627
    %715 = vmatprep.subr.bf16.mxu0 0
    %716 = vmatpush1.bf16.msra.mxu0 %v630
    %717 = vmatprep.subr.bf16.mxu0 0
    %718 = vmatpush1.bf16.msra.mxu0 %v633
    %719 = vmatprep.subr.bf16.mxu0 0
    %720 = vmatpush1.bf16.msra.mxu0 %v636
    %721 = vmatprep.subr.bf16.mxu0 0
    %722 = vmatpush1.bf16.msra.mxu0 %v639
    %723 = vmatprep.subr.bf16.mxu0 0
    %724 = vmatpush1.bf16.msra.mxu0 %v642
    %725 = vmatprep.subr.bf16.mxu0 0
    %726 = vmatpush1.bf16.msra.mxu0 %v645
    %727 = vmatprep.subr.bf16.mxu0 0
    %728 = vmatpush1.bf16.msra.mxu0 0
    %729 = vmatprep.subr.bf16.mxu0 0
    %730 = vmatpush1.bf16.msra.mxu0 0
    %731 = vmatprep.subr.bf16.mxu0 0
    %732 = vmatpush1.bf16.msra.mxu0 0
    %733 = vmatprep.subr.bf16.mxu0 0
    %734 = vmatpush1.bf16.msra.mxu0 0
    %735 = vmatprep.subr.bf16.mxu0 0
    %736 = vmatpush1.bf16.msra.mxu0 0
    %737 = vmatprep.subr.bf16.mxu0 0
    %738 = vmatpush1.bf16.msra.mxu0 0
    %739 = vmatprep.subr.bf16.mxu0 0
    %740 = vmatpush1.bf16.msra.mxu0 0
    %741 = vmatprep.subr.bf16.mxu0 0
    %742 = vmatpush1.bf16.msra.mxu0 0
    %743 = vmatprep.mubr.bf16.mxu0 0
    %744 = vmatmul.mubr.bf16.gmra.mrb[0].mxu0 %v509
    %v745 = vpop.f32.mrb[0].mxu0
    %v746 = vadd.f32 0.0, %v745
    %v747 = vpop.f32.mrb[0].mxu0
    %v748 = vpop.f32.mrb[0].mxu0
    %v749 = vpop.f32.mrb[0].mxu0
    %750 = vdwg.mxu0
    %v751 = vadd.f32 %v508, %v705
    %v752 = vxor.u32 %v751, 2147483648
    %v753 = vmul.f32 %v752, 1.442695
    %v754 = vpow.pop %v753
    %v755 = vadd.f32 %v754, 1.0
    %v756 = vrcp.pop %v755
    %v757 = vmul.f32 1.0, %v756
    %v759 = vrot.slane %v508, 1
    %v761 = vadd.f32 %v759, %v707
    %v762 = vxor.u32 %v761, 2147483648
    %v763 = vmul.f32 %v762, 1.442695
    %v764 = vpow.pop %v763
    %v765 = vadd.f32 %v764, 1.0
    %v766 = vrcp.pop %v765
    %v767 = vmul.f32 1.0, %v766
    %v768 = vld [vmem:[%s5] sm:$0x1]
    %v769 = vadd.f32 %v746, %v768
    %v770 = vmul.f32 %v757, %v769
    %v771 = vrot.slane %v508, 2
    %v773 = vadd.f32 %v771, %v770
    %v774 = vtanh.pop %v773
    %v775 = vsub.f32 1.0, %v767
    %v776 = vmul.f32 %v775, %v774
    %v777 = vmul.f32 %v767, %v505
    %v778 = vadd.f32 %v776, %v777
    %779 = vst [vmem:[#allocation3 + $0x1] sm:$0x1] %v778
    %s780 = scalar_lea.vmem [#allocation2], 2
    %v781 = vld [vmem:[%s780] ss:$8 sm:$0x7]
    %v782 = vpack.c.bf16 %v778, %v778
    %v783 = vld [vmem:[#allocation9] sm:$0xff]
    %v784 = vld [vmem:[#allocation9 + $0x8] sm:$0xf]
    %v785 = vld [vmem:[#allocation9 + $0xc] sm:$0xff]
    %v786 = vld [vmem:[#allocation9 + $0x14] sm:$0xf]
    %v787 = vld [vmem:[#allocation9 + $0x18] sm:$0xff]
    %v788 = vld [vmem:[#allocation9 + $0x20] sm:$0xf]
    %v789 = vld [vmem:[#allocation9 + $0x24] sm:$0xff]
    %v790 = vld [vmem:[#allocation9 + $0x2c] sm:$0xf]
    %v791 = vld [vmem:[#allocation9 + $0x30] sm:$0xff]
    %v792 = vld [vmem:[#allocation9 + $0x38] sm:$0xf]
    %v793 = vld [vmem:[#allocation9 + $0x3c] sm:$0xff]
    %v794 = vld [vmem:[#allocation9 + $0x44] sm:$0xf]
    %v795 = vld [vmem:[#allocation9 + $0x48] sm:$0xff]
    %v796 = vld [vmem:[#allocation9 + $0x50] sm:$0xf]
    %v797 = vld [vmem:[#allocation9 + $0x54] sm:$0xff]
    %v798 = vld [vmem:[#allocation9 + $0x5c] sm:$0xf]
    %v799 = vld [vmem:[#allocation9 + $0x60] sm:$0xff]
    %v800 = vld [vmem:[#allocation9 + $0x68] sm:$0xf]
    %v801 = vld [vmem:[#allocation9 + $0x6c] sm:$0xff]
    %v802 = vld [vmem:[#allocation9 + $0x74] sm:$0xf]
    %v803 = vld [vmem:[#allocation9 + $0x78] sm:$0xff]
    %v804 = vld [vmem:[#allocation9 + $0x80] sm:$0xf]
    %v805 = vld [vmem:[#allocation9 + $0x84] sm:$0xff]
    %v806 = vld [vmem:[#allocation9 + $0x8c] sm:$0xf]
    %v807 = vld [vmem:[#allocation9 + $0x90] sm:$0xff]
    %v808 = vld [vmem:[#allocation9 + $0x98] sm:$0xf]
    %v809 = vld [vmem:[#allocation9 + $0x9c] sm:$0xff]
    %v810 = vld [vmem:[#allocation9 + $0xa4] sm:$0xf]
    %v811 = vld [vmem:[#allocation9 + $0xa8] sm:$0xff]
    %v812 = vld [vmem:[#allocation9 + $0xb0] sm:$0xf]
    %v813 = vld [vmem:[#allocation9 + $0xb4] sm:$0xff]
    %v814 = vld [vmem:[#allocation9 + $0xbc] sm:$0xf]
    %v847 = vunpack.c.l.b16 %v783
    %v848 = vunpack.c.h.b16 %v783
    %v849 = vunpack.c.l.b16 %v784
    %v850 = vunpack.c.l.b16 %v785
    %v851 = vunpack.c.h.b16 %v785
    %v852 = vunpack.c.l.b16 %v786
    %v853 = vunpack.c.l.b16 %v787
    %v854 = vunpack.c.h.b16 %v787
    %v855 = vunpack.c.l.b16 %v788
    %v856 = vunpack.c.l.b16 %v789
    %v857 = vunpack.c.h.b16 %v789
    %v858 = vunpack.c.l.b16 %v790
    %v859 = vunpack.c.l.b16 %v791
    %v860 = vunpack.c.h.b16 %v791
    %v861 = vunpack.c.l.b16 %v792
    %v862 = vunpack.c.l.b16 %v793
    %v863 = vunpack.c.h.b16 %v793
    %v864 = vunpack.c.l.b16 %v794
    %v865 = vunpack.c.l.b16 %v795
    %v866 = vunpack.c.h.b16 %v795
    %v867 = vunpack.c.l.b16 %v796
    %v868 = vunpack.c.l.b16 %v797
    %v869 = vunpack.c.h.b16 %v797
    %v870 = vunpack.c.l.b16 %v798
    %v871 = vunpack.c.l.b16 %v799
    %v872 = vunpack.c.h.b16 %v799
    %v873 = vunpack.c.l.b16 %v800
    %v874 = vunpack.c.l.b16 %v801
    %v875 = vunpack.c.h.b16 %v801
    %v876 = vunpack.c.l.b16 %v802
    %v877 = vunpack.c.l.b16 %v803
    %v878 = vunpack.c.h.b16 %v803
    %v879 = vunpack.c.l.b16 %v804
    %v880 = vunpack.c.l.b16 %v805
    %v881 = vunpack.c.h.b16 %v805
    %v882 = vunpack.c.l.b16 %v806
    %v883 = vunpack.c.l.b16 %v807
    %v884 = vunpack.c.h.b16 %v807
    %v885 = vunpack.c.l.b16 %v808
    %v886 = vunpack.c.l.b16 %v809
    %v887 = vunpack.c.h.b16 %v809
    %v888 = vunpack.c.l.b16 %v810
    %v889 = vunpack.c.l.b16 %v811
    %v890 = vunpack.c.h.b16 %v811
    %v891 = vunpack.c.l.b16 %v812
    %v892 = vunpack.c.l.b16 %v813
    %v893 = vunpack.c.h.b16 %v813
    %v894 = vunpack.c.l.b16 %v814
    %v895 = vpack.c.b16 %v850, %v847
    %v896 = vpack.c.b16 %v851, %v848
    %v897 = vpack.c.b16 %v852, %v849
    %v898 = vpack.c.b16 %v856, %v853
    %v899 = vpack.c.b16 %v857, %v854
    %v900 = vpack.c.b16 %v858, %v855
    %v901 = vpack.c.b16 %v862, %v859
    %v902 = vpack.c.b16 %v863, %v860
    %v903 = vpack.c.b16 %v864, %v861
    %v904 = vpack.c.b16 %v868, %v865
    %v905 = vpack.c.b16 %v869, %v866
    %v906 = vpack.c.b16 %v870, %v867
    %v907 = vpack.c.b16 %v874, %v871
    %v908 = vpack.c.b16 %v875, %v872
    %v909 = vpack.c.b16 %v876, %v873
    %v910 = vpack.c.b16 %v880, %v877
    %v911 = vpack.c.b16 %v881, %v878
    %v912 = vpack.c.b16 %v882, %v879
    %v913 = vpack.c.b16 %v886, %v883
    %v914 = vpack.c.b16 %v887, %v884
    %v915 = vpack.c.b16 %v888, %v885
    %v916 = vpack.c.b16 %v892, %v889
    %v917 = vpack.c.b16 %v893, %v890
    %v918 = vpack.c.b16 %v894, %v891
    %943 = vmatprep.subr.bf16.mxu0 %v896
    %944 = vmatpush1.bf16.msra.mxu0 %v895
    %945 = vmatprep.subr.bf16.mxu0 %v899
    %946 = vmatpush1.bf16.msra.mxu0 %v898
    %947 = vmatprep.subr.bf16.mxu0 %v902
    %948 = vmatpush1.bf16.msra.mxu0 %v901
    %949 = vmatprep.subr.bf16.mxu0 %v905
    %950 = vmatpush1.bf16.msra.mxu0 %v904
    %951 = vmatprep.subr.bf16.mxu0 %v908
    %952 = vmatpush1.bf16.msra.mxu0 %v907
    %953 = vmatprep.subr.bf16.mxu0 %v911
    %954 = vmatpush1.bf16.msra.mxu0 %v910
    %955 = vmatprep.subr.bf16.mxu0 %v914
    %956 = vmatpush1.bf16.msra.mxu0 %v913
    %957 = vmatprep.subr.bf16.mxu0 %v917
    %958 = vmatpush1.bf16.msra.mxu0 %v916
    %959 = vmatprep.subr.bf16.mxu0 0
    %960 = vmatpush1.bf16.msra.mxu0 0
    %961 = vmatprep.subr.bf16.mxu0 0
    %962 = vmatpush1.bf16.msra.mxu0 0
    %963 = vmatprep.subr.bf16.mxu0 0
    %964 = vmatpush1.bf16.msra.mxu0 0
    %965 = vmatprep.subr.bf16.mxu0 0
    %966 = vmatpush1.bf16.msra.mxu0 0
    %967 = vmatprep.subr.bf16.mxu0 0
    %968 = vmatpush1.bf16.msra.mxu0 0
    %969 = vmatprep.subr.bf16.mxu0 0
    %970 = vmatpush1.bf16.msra.mxu0 0
    %971 = vmatprep.subr.bf16.mxu0 0
    %972 = vmatpush1.bf16.msra.mxu0 0
    %973 = vmatprep.subr.bf16.mxu0 0
    %974 = vmatpush1.bf16.msra.mxu0 0
    %975 = vmatprep.mubr.bf16.mxu0 0
    %976 = vmatmul.mubr.bf16.gmra.mrb[0].mxu0 %v782
    %v977 = vpop.f32.mrb[0].mxu0
    %v978 = vadd.f32 0.0, %v977
    %v979 = vpop.f32.mrb[0].mxu0
    %v980 = vadd.f32 0.0, %v979
    %v981 = vpop.f32.mrb[0].mxu0
    %v982 = vpop.f32.mrb[0].mxu0
    %983 = vdwg.mxu0
    %984 = vmatprep.subr.bf16.mxu0 0
    %985 = vmatpush1.bf16.msra.mxu0 %v897
    %986 = vmatprep.subr.bf16.mxu0 0
    %987 = vmatpush1.bf16.msra.mxu0 %v900
    %988 = vmatprep.subr.bf16.mxu0 0
    %989 = vmatpush1.bf16.msra.mxu0 %v903
    %990 = vmatprep.subr.bf16.mxu0 0
    %991 = vmatpush1.bf16.msra.mxu0 %v906
    %992 = vmatprep.subr.bf16.mxu0 0
    %993 = vmatpush1.bf16.msra.mxu0 %v909
    %994 = vmatprep.subr.bf16.mxu0 0
    %995 = vmatpush1.bf16.msra.mxu0 %v912
    %996 = vmatprep.subr.bf16.mxu0 0
    %997 = vmatpush1.bf16.msra.mxu0 %v915
    %998 = vmatprep.subr.bf16.mxu0 0
    %999 = vmatpush1.bf16.msra.mxu0 %v918
    %1000 = vmatprep.subr.bf16.mxu0 0
    %1001 = vmatpush1.bf16.msra.mxu0 0
    %1002 = vmatprep.subr.bf16.mxu0 0
    %1003 = vmatpush1.bf16.msra.mxu0 0
    %1004 = vmatprep.subr.bf16.mxu0 0
    %1005 = vmatpush1.bf16.msra.mxu0 0
    %1006 = vmatprep.subr.bf16.mxu0 0
    %1007 = vmatpush1.bf16.msra.mxu0 0
    %1008 = vmatprep.subr.bf16.mxu0 0
    %1009 = vmatpush1.bf16.msra.mxu0 0
    %1010 = vmatprep.subr.bf16.mxu0 0
    %1011 = vmatpush1.bf16.msra.mxu0 0
    %1012 = vmatprep.subr.bf16.mxu0 0
    %1013 = vmatpush1.bf16.msra.mxu0 0
    %1014 = vmatprep.subr.bf16.mxu0 0
    %1015 = vmatpush1.bf16.msra.mxu0 0
    %1016 = vmatprep.mubr.bf16.mxu0 0
    %1017 = vmatmul.mubr.bf16.gmra.mrb[0].mxu0 %v782
    %v1018 = vpop.f32.mrb[0].mxu0
    %v1019 = vadd.f32 0.0, %v1018
    %v1020 = vpop.f32.mrb[0].mxu0
    %v1021 = vpop.f32.mrb[0].mxu0
    %v1022 = vpop.f32.mrb[0].mxu0
    %1023 = vdwg.mxu0
    %v1024 = vadd.f32 %v781, %v978
    %v1025 = vxor.u32 %v1024, 2147483648
    %v1026 = vmul.f32 %v1025, 1.442695
    %v1027 = vpow.pop %v1026
    %v1028 = vadd.f32 %v1027, 1.0
    %v1029 = vrcp.pop %v1028
    %v1030 = vmul.f32 1.0, %v1029
    %v1032 = vrot.slane %v781, 1
    %v1034 = vadd.f32 %v1032, %v980
    %v1035 = vxor.u32 %v1034, 2147483648
    %v1036 = vmul.f32 %v1035, 1.442695
    %v1037 = vpow.pop %v1036
    %v1038 = vadd.f32 %v1037, 1.0
    %v1039 = vrcp.pop %v1038
    %v1040 = vmul.f32 1.0, %v1039
    %v1041 = vld [vmem:[%s5] sm:$0x1]
    %v1042 = vadd.f32 %v1019, %v1041
    %v1043 = vmul.f32 %v1030, %v1042
    %v1044 = vrot.slane %v781, 2
    %v1046 = vadd.f32 %v1044, %v1043
    %v1047 = vtanh.pop %v1046
    %v1048 = vsub.f32 1.0, %v1040
    %v1049 = vmul.f32 %v1048, %v1047
    %v1050 = vmul.f32 %v1040, %v778
    %v1051 = vadd.f32 %v1049, %v1050
    %1052 = vst [vmem:[#allocation3 + $0x2] sm:$0x1] %v1051
    %s1053 = scalar_lea.vmem [#allocation2], 3
    %v1054 = vld [vmem:[%s1053] ss:$8 sm:$0x7]
    %v1055 = vpack.c.bf16 %v1051, %v1051
    %v1056 = vld [vmem:[#allocation9] sm:$0xff]
    %v1057 = vld [vmem:[#allocation9 + $0x8] sm:$0xf]
    %v1058 = vld [vmem:[#allocation9 + $0xc] sm:$0xff]
    %v1059 = vld [vmem:[#allocation9 + $0x14] sm:$0xf]
    %v1060 = vld [vmem:[#allocation9 + $0x18] sm:$0xff]
    %v1061 = vld [vmem:[#allocation9 + $0x20] sm:$0xf]
    %v1062 = vld [vmem:[#allocation9 + $0x24] sm:$0xff]
    %v1063 = vld [vmem:[#allocation9 + $0x2c] sm:$0xf]
    %v1064 = vld [vmem:[#allocation9 + $0x30] sm:$0xff]
    %v1065 = vld [vmem:[#allocation9 + $0x38] sm:$0xf]
    %v1066 = vld [vmem:[#allocation9 + $0x3c] sm:$0xff]
    %v1067 = vld [vmem:[#allocation9 + $0x44] sm:$0xf]
    %v1068 = vld [vmem:[#allocation9 + $0x48] sm:$0xff]
    %v1069 = vld [vmem:[#allocation9 + $0x50] sm:$0xf]
    %v1070 = vld [vmem:[#allocation9 + $0x54] sm:$0xff]
    %v1071 = vld [vmem:[#allocation9 + $0x5c] sm:$0xf]
    %v1072 = vld [vmem:[#allocation9 + $0x60] sm:$0xff]
    %v1073 = vld [vmem:[#allocation9 + $0x68] sm:$0xf]
    %v1074 = vld [vmem:[#allocation9 + $0x6c] sm:$0xff]
    %v1075 = vld [vmem:[#allocation9 + $0x74] sm:$0xf]
    %v1076 = vld [vmem:[#allocation9 + $0x78] sm:$0xff]
    %v1077 = vld [vmem:[#allocation9 + $0x80] sm:$0xf]
    %v1078 = vld [vmem:[#allocation9 + $0x84] sm:$0xff]
    %v1079 = vld [vmem:[#allocation9 + $0x8c] sm:$0xf]
    %v1080 = vld [vmem:[#allocation9 + $0x90] sm:$0xff]
    %v1081 = vld [vmem:[#allocation9 + $0x98] sm:$0xf]
    %v1082 = vld [vmem:[#allocation9 + $0x9c] sm:$0xff]
    %v1083 = vld [vmem:[#allocation9 + $0xa4] sm:$0xf]
    %v1084 = vld [vmem:[#allocation9 + $0xa8] sm:$0xff]
    %v1085 = vld [vmem:[#allocation9 + $0xb0] sm:$0xf]
    %v1086 = vld [vmem:[#allocation9 + $0xb4] sm:$0xff]
    %v1087 = vld [vmem:[#allocation9 + $0xbc] sm:$0xf]
    %v1120 = vunpack.c.l.b16 %v1056
    %v1121 = vunpack.c.h.b16 %v1056
    %v1122 = vunpack.c.l.b16 %v1057
    %v1123 = vunpack.c.l.b16 %v1058
    %v1124 = vunpack.c.h.b16 %v1058
    %v1125 = vunpack.c.l.b16 %v1059
    %v1126 = vunpack.c.l.b16 %v1060
    %v1127 = vunpack.c.h.b16 %v1060
    %v1128 = vunpack.c.l.b16 %v1061
    %v1129 = vunpack.c.l.b16 %v1062
    %v1130 = vunpack.c.h.b16 %v1062
    %v1131 = vunpack.c.l.b16 %v1063
    %v1132 = vunpack.c.l.b16 %v1064
    %v1133 = vunpack.c.h.b16 %v1064
    %v1134 = vunpack.c.l.b16 %v1065
    %v1135 = vunpack.c.l.b16 %v1066
    %v1136 = vunpack.c.h.b16 %v1066
    %v1137 = vunpack.c.l.b16 %v1067
    %v1138 = vunpack.c.l.b16 %v1068
    %v1139 = vunpack.c.h.b16 %v1068
    %v1140 = vunpack.c.l.b16 %v1069
    %v1141 = vunpack.c.l.b16 %v1070
    %v1142 = vunpack.c.h.b16 %v1070
    %v1143 = vunpack.c.l.b16 %v1071
    %v1144 = vunpack.c.l.b16 %v1072
    %v1145 = vunpack.c.h.b16 %v1072
    %v1146 = vunpack.c.l.b16 %v1073
    %v1147 = vunpack.c.l.b16 %v1074
    %v1148 = vunpack.c.h.b16 %v1074
    %v1149 = vunpack.c.l.b16 %v1075
    %v1150 = vunpack.c.l.b16 %v1076
    %v1151 = vunpack.c.h.b16 %v1076
    %v1152 = vunpack.c.l.b16 %v1077
    %v1153 = vunpack.c.l.b16 %v1078
    %v1154 = vunpack.c.h.b16 %v1078
    %v1155 = vunpack.c.l.b16 %v1079
    %v1156 = vunpack.c.l.b16 %v1080
    %v1157 = vunpack.c.h.b16 %v1080
    %v1158 = vunpack.c.l.b16 %v1081
    %v1159 = vunpack.c.l.b16 %v1082
    %v1160 = vunpack.c.h.b16 %v1082
    %v1161 = vunpack.c.l.b16 %v1083
    %v1162 = vunpack.c.l.b16 %v1084
    %v1163 = vunpack.c.h.b16 %v1084
    %v1164 = vunpack.c.l.b16 %v1085
    %v1165 = vunpack.c.l.b16 %v1086
    %v1166 = vunpack.c.h.b16 %v1086
    %v1167 = vunpack.c.l.b16 %v1087
    %v1168 = vpack.c.b16 %v1123, %v1120
    %v1169 = vpack.c.b16 %v1124, %v1121
    %v1170 = vpack.c.b16 %v1125, %v1122
    %v1171 = vpack.c.b16 %v1129, %v1126
    %v1172 = vpack.c.b16 %v1130, %v1127
    %v1173 = vpack.c.b16 %v1131, %v1128
    %v1174 = vpack.c.b16 %v1135, %v1132
    %v1175 = vpack.c.b16 %v1136, %v1133
    %v1176 = vpack.c.b16 %v1137, %v1134
    %v1177 = vpack.c.b16 %v1141, %v1138
    %v1178 = vpack.c.b16 %v1142, %v1139
    %v1179 = vpack.c.b16 %v1143, %v1140
    %v1180 = vpack.c.b16 %v1147, %v1144
    %v1181 = vpack.c.b16 %v1148, %v1145
    %v1182 = vpack.c.b16 %v1149, %v1146
    %v1183 = vpack.c.b16 %v1153, %v1150
    %v1184 = vpack.c.b16 %v1154, %v1151
    %v1185 = vpack.c.b16 %v1155, %v1152
    %v1186 = vpack.c.b16 %v1159, %v1156
    %v1187 = vpack.c.b16 %v1160, %v1157
    %v1188 = vpack.c.b16 %v1161, %v1158
    %v1189 = vpack.c.b16 %v1165, %v1162
    %v1190 = vpack.c.b16 %v1166, %v1163
    %v1191 = vpack.c.b16 %v1167, %v1164
    %1216 = vmatprep.subr.bf16.mxu0 %v1169
    %1217 = vmatpush1.bf16.msra.mxu0 %v1168
    %1218 = vmatprep.subr.bf16.mxu0 %v1172
    %1219 = vmatpush1.bf16.msra.mxu0 %v1171
    %1220 = vmatprep.subr.bf16.mxu0 %v1175
    %1221 = vmatpush1.bf16.msra.mxu0 %v1174
    %1222 = vmatprep.subr.bf16.mxu0 %v1178
    %1223 = vmatpush1.bf16.msra.mxu0 %v1177
    %1224 = vmatprep.subr.bf16.mxu0 %v1181
    %1225 = vmatpush1.bf16.msra.mxu0 %v1180
    %1226 = vmatprep.subr.bf16.mxu0 %v1184
    %1227 = vmatpush1.bf16.msra.mxu0 %v1183
    %1228 = vmatprep.subr.bf16.mxu0 %v1187
    %1229 = vmatpush1.bf16.msra.mxu0 %v1186
    %1230 = vmatprep.subr.bf16.mxu0 %v1190
    %1231 = vmatpush1.bf16.msra.mxu0 %v1189
    %1232 = vmatprep.subr.bf16.mxu0 0
    %1233 = vmatpush1.bf16.msra.mxu0 0
    %1234 = vmatprep.subr.bf16.mxu0 0
    %1235 = vmatpush1.bf16.msra.mxu0 0
    %1236 = vmatprep.subr.bf16.mxu0 0
    %1237 = vmatpush1.bf16.msra.mxu0 0
    %1238 = vmatprep.subr.bf16.mxu0 0
    %1239 = vmatpush1.bf16.msra.mxu0 0
    %1240 = vmatprep.subr.bf16.mxu0 0
    %1241 = vmatpush1.bf16.msra.mxu0 0
    %1242 = vmatprep.subr.bf16.mxu0 0
    %1243 = vmatpush1.bf16.msra.mxu0 0
    %1244 = vmatprep.subr.bf16.mxu0 0
    %1245 = vmatpush1.bf16.msra.mxu0 0
    %1246 = vmatprep.subr.bf16.mxu0 0
    %1247 = vmatpush1.bf16.msra.mxu0 0
    %1248 = vmatprep.mubr.bf16.mxu0 0
    %1249 = vmatmul.mubr.bf16.gmra.mrb[0].mxu0 %v1055
    %v1250 = vpop.f32.mrb[0].mxu0
    %v1251 = vadd.f32 0.0, %v1250
    %v1252 = vpop.f32.mrb[0].mxu0
    %v1253 = vadd.f32 0.0, %v1252
    %v1254 = vpop.f32.mrb[0].mxu0
    %v1255 = vpop.f32.mrb[0].mxu0
    %1256 = vdwg.mxu0
    %1257 = vmatprep.subr.bf16.mxu0 0
    %1258 = vmatpush1.bf16.msra.mxu0 %v1170
    %1259 = vmatprep.subr.bf16.mxu0 0
    %1260 = vmatpush1.bf16.msra.mxu0 %v1173
    %1261 = vmatprep.subr.bf16.mxu0 0
    %1262 = vmatpush1.bf16.msra.mxu0 %v1176
    %1263 = vmatprep.subr.bf16.mxu0 0
    %1264 = vmatpush1.bf16.msra.mxu0 %v1179
    %1265 = vmatprep.subr.bf16.mxu0 0
    %1266 = vmatpush1.bf16.msra.mxu0 %v1182
    %1267 = vmatprep.subr.bf16.mxu0 0
    %1268 = vmatpush1.bf16.msra.mxu0 %v1185
    %1269 = vmatprep.subr.bf16.mxu0 0
    %1270 = vmatpush1.bf16.msra.mxu0 %v1188
    %1271 = vmatprep.subr.bf16.mxu0 0
    %1272 = vmatpush1.bf16.msra.mxu0 %v1191
    %1273 = vmatprep.subr.bf16.mxu0 0
    %1274 = vmatpush1.bf16.msra.mxu0 0
    %1275 = vmatprep.subr.bf16.mxu0 0
    %1276 = vmatpush1.bf16.msra.mxu0 0
    %1277 = vmatprep.subr.bf16.mxu0 0
    %1278 = vmatpush1.bf16.msra.mxu0 0
    %1279 = vmatprep.subr.bf16.mxu0 0
    %1280 = vmatpush1.bf16.msra.mxu0 0
    %1281 = vmatprep.subr.bf16.mxu0 0
    %1282 = vmatpush1.bf16.msra.mxu0 0
    %1283 = vmatprep.subr.bf16.mxu0 0
    %1284 = vmatpush1.bf16.msra.mxu0 0
    %1285 = vmatprep.subr.bf16.mxu0 0
    %1286 = vmatpush1.bf16.msra.mxu0 0
    %1287 = vmatprep.subr.bf16.mxu0 0
    %1288 = vmatpush1.bf16.msra.mxu0 0
    %1289 = vmatprep.mubr.bf16.mxu0 0
    %1290 = vmatmul.mubr.bf16.gmra.mrb[0].mxu0 %v1055
    %v1291 = vpop.f32.mrb[0].mxu0
    %v1292 = vadd.f32 0.0, %v1291
    %v1293 = vpop.f32.mrb[0].mxu0
    %v1294 = vpop.f32.mrb[0].mxu0
    %v1295 = vpop.f32.mrb[0].mxu0
    %1296 = vdwg.mxu0
    %v1297 = vadd.f32 %v1054, %v1251
    %v1298 = vxor.u32 %v1297, 2147483648
    %v1299 = vmul.f32 %v1298, 1.442695
    %v1300 = vpow.pop %v1299
    %v1301 = vadd.f32 %v1300, 1.0
    %v1302 = vrcp.pop %v1301
    %v1303 = vmul.f32 1.0, %v1302
    %v1305 = vrot.slane %v1054, 1
    %v1307 = vadd.f32 %v1305, %v1253
    %v1308 = vxor.u32 %v1307, 2147483648
    %v1309 = vmul.f32 %v1308, 1.442695
    %v1310 = vpow.pop %v1309
    %v1311 = vadd.f32 %v1310, 1.0
    %v1312 = vrcp.pop %v1311
    %v1313 = vmul.f32 1.0, %v1312
    %v1314 = vld [vmem:[%s5] sm:$0x1]
    %v1315 = vadd.f32 %v1292, %v1314
    %v1316 = vmul.f32 %v1303, %v1315
    %v1317 = vrot.slane %v1054, 2
    %v1319 = vadd.f32 %v1317, %v1316
    %v1320 = vtanh.pop %v1319
    %v1321 = vsub.f32 1.0, %v1313
    %v1322 = vmul.f32 %v1321, %v1320
    %v1323 = vmul.f32 %v1313, %v1051
    %v1324 = vadd.f32 %v1322, %v1323
    %1325 = vst [vmem:[#allocation3 + $0x3] sm:$0x1] %v1324
    %s1326 = scalar_lea.vmem [#allocation2], 4
    %v1327 = vld [vmem:[%s1326] ss:$8 sm:$0x7]
    %v1328 = vpack.c.bf16 %v1324, %v1324
    %v1329 = vld [vmem:[#allocation9] sm:$0xff]
    %v1330 = vld [vmem:[#allocation9 + $0x8] sm:$0xf]
    %v1331 = vld [vmem:[#allocation9 + $0xc] sm:$0xff]
    %v1332 = vld [vmem:[#allocation9 + $0x14] sm:$0xf]
    %v1333 = vld [vmem:[#allocation9 + $0x18] sm:$0xff]
    %v1334 = vld [vmem:[#allocation9 + $0x20] sm:$0xf]
    %v1335 = vld [vmem:[#allocation9 + $0x24] sm:$0xff]
    %v1336 = vld [vmem:[#allocation9 + $0x2c] sm:$0xf]
    %v1337 = vld [vmem:[#allocation9 + $0x30] sm:$0xff]
    %v1338 = vld [vmem:[#allocation9 + $0x38] sm:$0xf]
    %v1339 = vld [vmem:[#allocation9 + $0x3c] sm:$0xff]
    %v1340 = vld [vmem:[#allocation9 + $0x44] sm:$0xf]
    %v1341 = vld [vmem:[#allocation9 + $0x48] sm:$0xff]
    %v1342 = vld [vmem:[#allocation9 + $0x50] sm:$0xf]
    %v1343 = vld [vmem:[#allocation9 + $0x54] sm:$0xff]
    %v1344 = vld [vmem:[#allocation9 + $0x5c] sm:$0xf]
    %v1345 = vld [vmem:[#allocation9 + $0x60] sm:$0xff]
    %v1346 = vld [vmem:[#allocation9 + $0x68] sm:$0xf]
    %v1347 = vld [vmem:[#allocation9 + $0x6c] sm:$0xff]
    %v1348 = vld [vmem:[#allocation9 + $0x74] sm:$0xf]
    %v1349 = vld [vmem:[#allocation9 + $0x78] sm:$0xff]
    %v1350 = vld [vmem:[#allocation9 + $0x80] sm:$0xf]
    %v1351 = vld [vmem:[#allocation9 + $0x84] sm:$0xff]
    %v1352 = vld [vmem:[#allocation9 + $0x8c] sm:$0xf]
    %v1353 = vld [vmem:[#allocation9 + $0x90] sm:$0xff]
    %v1354 = vld [vmem:[#allocation9 + $0x98] sm:$0xf]
    %v1355 = vld [vmem:[#allocation9 + $0x9c] sm:$0xff]
    %v1356 = vld [vmem:[#allocation9 + $0xa4] sm:$0xf]
    %v1357 = vld [vmem:[#allocation9 + $0xa8] sm:$0xff]
    %v1358 = vld [vmem:[#allocation9 + $0xb0] sm:$0xf]
    %v1359 = vld [vmem:[#allocation9 + $0xb4] sm:$0xff]
    %v1360 = vld [vmem:[#allocation9 + $0xbc] sm:$0xf]
    %v1393 = vunpack.c.l.b16 %v1329
    %v1394 = vunpack.c.h.b16 %v1329
    %v1395 = vunpack.c.l.b16 %v1330
    %v1396 = vunpack.c.l.b16 %v1331
    %v1397 = vunpack.c.h.b16 %v1331
    %v1398 = vunpack.c.l.b16 %v1332
    %v1399 = vunpack.c.l.b16 %v1333
    %v1400 = vunpack.c.h.b16 %v1333
    %v1401 = vunpack.c.l.b16 %v1334
    %v1402 = vunpack.c.l.b16 %v1335
    %v1403 = vunpack.c.h.b16 %v1335
    %v1404 = vunpack.c.l.b16 %v1336
    %v1405 = vunpack.c.l.b16 %v1337
    %v1406 = vunpack.c.h.b16 %v1337
    %v1407 = vunpack.c.l.b16 %v1338
    %v1408 = vunpack.c.l.b16 %v1339
    %v1409 = vunpack.c.h.b16 %v1339
    %v1410 = vunpack.c.l.b16 %v1340
    %v1411 = vunpack.c.l.b16 %v1341
    %v1412 = vunpack.c.h.b16 %v1341
    %v1413 = vunpack.c.l.b16 %v1342
    %v1414 = vunpack.c.l.b16 %v1343
    %v1415 = vunpack.c.h.b16 %v1343
    %v1416 = vunpack.c.l.b16 %v1344
    %v1417 = vunpack.c.l.b16 %v1345
    %v1418 = vunpack.c.h.b16 %v1345
    %v1419 = vunpack.c.l.b16 %v1346
    %v1420 = vunpack.c.l.b16 %v1347
    %v1421 = vunpack.c.h.b16 %v1347
    %v1422 = vunpack.c.l.b16 %v1348
    %v1423 = vunpack.c.l.b16 %v1349
    %v1424 = vunpack.c.h.b16 %v1349
    %v1425 = vunpack.c.l.b16 %v1350
    %v1426 = vunpack.c.l.b16 %v1351
    %v1427 = vunpack.c.h.b16 %v1351
    %v1428 = vunpack.c.l.b16 %v1352
    %v1429 = vunpack.c.l.b16 %v1353
    %v1430 = vunpack.c.h.b16 %v1353
    %v1431 = vunpack.c.l.b16 %v1354
    %v1432 = vunpack.c.l.b16 %v1355
    %v1433 = vunpack.c.h.b16 %v1355
    %v1434 = vunpack.c.l.b16 %v1356
    %v1435 = vunpack.c.l.b16 %v1357
    %v1436 = vunpack.c.h.b16 %v1357
    %v1437 = vunpack.c.l.b16 %v1358
    %v1438 = vunpack.c.l.b16 %v1359
    %v1439 = vunpack.c.h.b16 %v1359
    %v1440 = vunpack.c.l.b16 %v1360
    %v1441 = vpack.c.b16 %v1396, %v1393
    %v1442 = vpack.c.b16 %v1397, %v1394
    %v1443 = vpack.c.b16 %v1398, %v1395
    %v1444 = vpack.c.b16 %v1402, %v1399
    %v1445 = vpack.c.b16 %v1403, %v1400
    %v1446 = vpack.c.b16 %v1404, %v1401
    %v1447 = vpack.c.b16 %v1408, %v1405
    %v1448 = vpack.c.b16 %v1409, %v1406
    %v1449 = vpack.c.b16 %v1410, %v1407
    %v1450 = vpack.c.b16 %v1414, %v1411
    %v1451 = vpack.c.b16 %v1415, %v1412
    %v1452 = vpack.c.b16 %v1416, %v1413
    %v1453 = vpack.c.b16 %v1420, %v1417
    %v1454 = vpack.c.b16 %v1421, %v1418
    %v1455 = vpack.c.b16 %v1422, %v1419
    %v1456 = vpack.c.b16 %v1426, %v1423
    %v1457 = vpack.c.b16 %v1427, %v1424
    %v1458 = vpack.c.b16 %v1428, %v1425
    %v1459 = vpack.c.b16 %v1432, %v1429
    %v1460 = vpack.c.b16 %v1433, %v1430
    %v1461 = vpack.c.b16 %v1434, %v1431
    %v1462 = vpack.c.b16 %v1438, %v1435
    %v1463 = vpack.c.b16 %v1439, %v1436
    %v1464 = vpack.c.b16 %v1440, %v1437
    %1489 = vmatprep.subr.bf16.mxu0 %v1442
    %1490 = vmatpush1.bf16.msra.mxu0 %v1441
    %1491 = vmatprep.subr.bf16.mxu0 %v1445
    %1492 = vmatpush1.bf16.msra.mxu0 %v1444
    %1493 = vmatprep.subr.bf16.mxu0 %v1448
    %1494 = vmatpush1.bf16.msra.mxu0 %v1447
    %1495 = vmatprep.subr.bf16.mxu0 %v1451
    %1496 = vmatpush1.bf16.msra.mxu0 %v1450
    %1497 = vmatprep.subr.bf16.mxu0 %v1454
    %1498 = vmatpush1.bf16.msra.mxu0 %v1453
    %1499 = vmatprep.subr.bf16.mxu0 %v1457
    %1500 = vmatpush1.bf16.msra.mxu0 %v1456
    %1501 = vmatprep.subr.bf16.mxu0 %v1460
    %1502 = vmatpush1.bf16.msra.mxu0 %v1459
    %1503 = vmatprep.subr.bf16.mxu0 %v1463
    %1504 = vmatpush1.bf16.msra.mxu0 %v1462
    %1505 = vmatprep.subr.bf16.mxu0 0
    %1506 = vmatpush1.bf16.msra.mxu0 0
    %1507 = vmatprep.subr.bf16.mxu0 0
    %1508 = vmatpush1.bf16.msra.mxu0 0
    %1509 = vmatprep.subr.bf16.mxu0 0
    %1510 = vmatpush1.bf16.msra.mxu0 0
    %1511 = vmatprep.subr.bf16.mxu0 0
    %1512 = vmatpush1.bf16.msra.mxu0 0
    %1513 = vmatprep.subr.bf16.mxu0 0
    %1514 = vmatpush1.bf16.msra.mxu0 0
    %1515 = vmatprep.subr.bf16.mxu0 0
    %1516 = vmatpush1.bf16.msra.mxu0 0
    %1517 = vmatprep.subr.bf16.mxu0 0
    %1518 = vmatpush1.bf16.msra.mxu0 0
    %1519 = vmatprep.subr.bf16.mxu0 0
    %1520 = vmatpush1.bf16.msra.mxu0 0
    %1521 = vmatprep.mubr.bf16.mxu0 0
    %1522 = vmatmul.mubr.bf16.gmra.mrb[0].mxu0 %v1328
    %v1523 = vpop.f32.mrb[0].mxu0
    %v1524 = vadd.f32 0.0, %v1523
    %v1525 = vpop.f32.mrb[0].mxu0
    %v1526 = vadd.f32 0.0, %v1525
    %v1527 = vpop.f32.mrb[0].mxu0
    %v1528 = vpop.f32.mrb[0].mxu0
    %1529 = vdwg.mxu0
    %1530 = vmatprep.subr.bf16.mxu0 0
    %1531 = vmatpush1.bf16.msra.mxu0 %v1443
    %1532 = vmatprep.subr.bf16.mxu0 0
    %1533 = vmatpush1.bf16.msra.mxu0 %v1446
    %1534 = vmatprep.subr.bf16.mxu0 0
    %1535 = vmatpush1.bf16.msra.mxu0 %v1449
    %1536 = vmatprep.subr.bf16.mxu0 0
    %1537 = vmatpush1.bf16.msra.mxu0 %v1452
    %1538 = vmatprep.subr.bf16.mxu0 0
    %1539 = vmatpush1.bf16.msra.mxu0 %v1455
    %1540 = vmatprep.subr.bf16.mxu0 0
    %1541 = vmatpush1.bf16.msra.mxu0 %v1458
    %1542 = vmatprep.subr.bf16.mxu0 0
    %1543 = vmatpush1.bf16.msra.mxu0 %v1461
    %1544 = vmatprep.subr.bf16.mxu0 0
    %1545 = vmatpush1.bf16.msra.mxu0 %v1464
    %1546 = vmatprep.subr.bf16.mxu0 0
    %1547 = vmatpush1.bf16.msra.mxu0 0
    %1548 = vmatprep.subr.bf16.mxu0 0
    %1549 = vmatpush1.bf16.msra.mxu0 0
    %1550 = vmatprep.subr.bf16.mxu0 0
    %1551 = vmatpush1.bf16.msra.mxu0 0
    %1552 = vmatprep.subr.bf16.mxu0 0
    %1553 = vmatpush1.bf16.msra.mxu0 0
    %1554 = vmatprep.subr.bf16.mxu0 0
    %1555 = vmatpush1.bf16.msra.mxu0 0
    %1556 = vmatprep.subr.bf16.mxu0 0
    %1557 = vmatpush1.bf16.msra.mxu0 0
    %1558 = vmatprep.subr.bf16.mxu0 0
    %1559 = vmatpush1.bf16.msra.mxu0 0
    %1560 = vmatprep.subr.bf16.mxu0 0
    %1561 = vmatpush1.bf16.msra.mxu0 0
    %1562 = vmatprep.mubr.bf16.mxu0 0
    %1563 = vmatmul.mubr.bf16.gmra.mrb[0].mxu0 %v1328
    %v1564 = vpop.f32.mrb[0].mxu0
    %v1565 = vadd.f32 0.0, %v1564
    %v1566 = vpop.f32.mrb[0].mxu0
    %v1567 = vpop.f32.mrb[0].mxu0
    %v1568 = vpop.f32.mrb[0].mxu0
    %1569 = vdwg.mxu0
    %v1570 = vadd.f32 %v1327, %v1524
    %v1571 = vxor.u32 %v1570, 2147483648
    %v1572 = vmul.f32 %v1571, 1.442695
    %v1573 = vpow.pop %v1572
    %v1574 = vadd.f32 %v1573, 1.0
    %v1575 = vrcp.pop %v1574
    %v1576 = vmul.f32 1.0, %v1575
    %v1578 = vrot.slane %v1327, 1
    %v1580 = vadd.f32 %v1578, %v1526
    %v1581 = vxor.u32 %v1580, 2147483648
    %v1582 = vmul.f32 %v1581, 1.442695
    %v1583 = vpow.pop %v1582
    %v1584 = vadd.f32 %v1583, 1.0
    %v1585 = vrcp.pop %v1584
    %v1586 = vmul.f32 1.0, %v1585
    %v1587 = vld [vmem:[%s5] sm:$0x1]
    %v1588 = vadd.f32 %v1565, %v1587
    %v1589 = vmul.f32 %v1576, %v1588
    %v1590 = vrot.slane %v1327, 2
    %v1592 = vadd.f32 %v1590, %v1589
    %v1593 = vtanh.pop %v1592
    %v1594 = vsub.f32 1.0, %v1586
    %v1595 = vmul.f32 %v1594, %v1593
    %v1596 = vmul.f32 %v1586, %v1324
    %v1597 = vadd.f32 %v1595, %v1596
    %1598 = vst [vmem:[#allocation3 + $0x4] sm:$0x1] %v1597
    %s1599 = scalar_lea.vmem [#allocation2], 5
    %v1600 = vld [vmem:[%s1599] ss:$8 sm:$0x7]
    %v1601 = vpack.c.bf16 %v1597, %v1597
    %v1602 = vld [vmem:[#allocation9] sm:$0xff]
    %v1603 = vld [vmem:[#allocation9 + $0x8] sm:$0xf]
    %v1604 = vld [vmem:[#allocation9 + $0xc] sm:$0xff]
    %v1605 = vld [vmem:[#allocation9 + $0x14] sm:$0xf]
    %v1606 = vld [vmem:[#allocation9 + $0x18] sm:$0xff]
    %v1607 = vld [vmem:[#allocation9 + $0x20] sm:$0xf]
    %v1608 = vld [vmem:[#allocation9 + $0x24] sm:$0xff]
    %v1609 = vld [vmem:[#allocation9 + $0x2c] sm:$0xf]
    %v1610 = vld [vmem:[#allocation9 + $0x30] sm:$0xff]
    %v1611 = vld [vmem:[#allocation9 + $0x38] sm:$0xf]
    %v1612 = vld [vmem:[#allocation9 + $0x3c] sm:$0xff]
    %v1613 = vld [vmem:[#allocation9 + $0x44] sm:$0xf]
    %v1614 = vld [vmem:[#allocation9 + $0x48] sm:$0xff]
    %v1615 = vld [vmem:[#allocation9 + $0x50] sm:$0xf]
    %v1616 = vld [vmem:[#allocation9 + $0x54] sm:$0xff]
    %v1617 = vld [vmem:[#allocation9 + $0x5c] sm:$0xf]
    %v1618 = vld [vmem:[#allocation9 + $0x60] sm:$0xff]
    %v1619 = vld [vmem:[#allocation9 + $0x68] sm:$0xf]
    %v1620 = vld [vmem:[#allocation9 + $0x6c] sm:$0xff]
    %v1621 = vld [vmem:[#allocation9 + $0x74] sm:$0xf]
    %v1622 = vld [vmem:[#allocation9 + $0x78] sm:$0xff]
    %v1623 = vld [vmem:[#allocation9 + $0x80] sm:$0xf]
    %v1624 = vld [vmem:[#allocation9 + $0x84] sm:$0xff]
    %v1625 = vld [vmem:[#allocation9 + $0x8c] sm:$0xf]
    %v1626 = vld [vmem:[#allocation9 + $0x90] sm:$0xff]
    %v1627 = vld [vmem:[#allocation9 + $0x98] sm:$0xf]
    %v1628 = vld [vmem:[#allocation9 + $0x9c] sm:$0xff]
    %v1629 = vld [vmem:[#allocation9 + $0xa4] sm:$0xf]
    %v1630 = vld [vmem:[#allocation9 + $0xa8] sm:$0xff]
    %v1631 = vld [vmem:[#allocation9 + $0xb0] sm:$0xf]
    %v1632 = vld [vmem:[#allocation9 + $0xb4] sm:$0xff]
    %v1633 = vld [vmem:[#allocation9 + $0xbc] sm:$0xf]
    %v1666 = vunpack.c.l.b16 %v1602
    %v1667 = vunpack.c.h.b16 %v1602
    %v1668 = vunpack.c.l.b16 %v1603
    %v1669 = vunpack.c.l.b16 %v1604
    %v1670 = vunpack.c.h.b16 %v1604
    %v1671 = vunpack.c.l.b16 %v1605
    %v1672 = vunpack.c.l.b16 %v1606
    %v1673 = vunpack.c.h.b16 %v1606
    %v1674 = vunpack.c.l.b16 %v1607
    %v1675 = vunpack.c.l.b16 %v1608
    %v1676 = vunpack.c.h.b16 %v1608
    %v1677 = vunpack.c.l.b16 %v1609
    %v1678 = vunpack.c.l.b16 %v1610
    %v1679 = vunpack.c.h.b16 %v1610
    %v1680 = vunpack.c.l.b16 %v1611
    %v1681 = vunpack.c.l.b16 %v1612
    %v1682 = vunpack.c.h.b16 %v1612
    %v1683 = vunpack.c.l.b16 %v1613
    %v1684 = vunpack.c.l.b16 %v1614
    %v1685 = vunpack.c.h.b16 %v1614
    %v1686 = vunpack.c.l.b16 %v1615
    %v1687 = vunpack.c.l.b16 %v1616
    %v1688 = vunpack.c.h.b16 %v1616
    %v1689 = vunpack.c.l.b16 %v1617
    %v1690 = vunpack.c.l.b16 %v1618
    %v1691 = vunpack.c.h.b16 %v1618
    %v1692 = vunpack.c.l.b16 %v1619
    %v1693 = vunpack.c.l.b16 %v1620
    %v1694 = vunpack.c.h.b16 %v1620
    %v1695 = vunpack.c.l.b16 %v1621
    %v1696 = vunpack.c.l.b16 %v1622
    %v1697 = vunpack.c.h.b16 %v1622
    %v1698 = vunpack.c.l.b16 %v1623
    %v1699 = vunpack.c.l.b16 %v1624
    %v1700 = vunpack.c.h.b16 %v1624
    %v1701 = vunpack.c.l.b16 %v1625
    %v1702 = vunpack.c.l.b16 %v1626
    %v1703 = vunpack.c.h.b16 %v1626
    %v1704 = vunpack.c.l.b16 %v1627
    %v1705 = vunpack.c.l.b16 %v1628
    %v1706 = vunpack.c.h.b16 %v1628
    %v1707 = vunpack.c.l.b16 %v1629
    %v1708 = vunpack.c.l.b16 %v1630
    %v1709 = vunpack.c.h.b16 %v1630
    %v1710 = vunpack.c.l.b16 %v1631
    %v1711 = vunpack.c.l.b16 %v1632
    %v1712 = vunpack.c.h.b16 %v1632
    %v1713 = vunpack.c.l.b16 %v1633
    %v1714 = vpack.c.b16 %v1669, %v1666
    %v1715 = vpack.c.b16 %v1670, %v1667
    %v1716 = vpack.c.b16 %v1671, %v1668
    %v1717 = vpack.c.b16 %v1675, %v1672
    %v1718 = vpack.c.b16 %v1676, %v1673
    %v1719 = vpack.c.b16 %v1677, %v1674
    %v1720 = vpack.c.b16 %v1681, %v1678
    %v1721 = vpack.c.b16 %v1682, %v1679
    %v1722 = vpack.c.b16 %v1683, %v1680
    %v1723 = vpack.c.b16 %v1687, %v1684
    %v1724 = vpack.c.b16 %v1688, %v1685
    %v1725 = vpack.c.b16 %v1689, %v1686
    %v1726 = vpack.c.b16 %v1693, %v1690
    %v1727 = vpack.c.b16 %v1694, %v1691
    %v1728 = vpack.c.b16 %v1695, %v1692
    %v1729 = vpack.c.b16 %v1699, %v1696
    %v1730 = vpack.c.b16 %v1700, %v1697
    %v1731 = vpack.c.b16 %v1701, %v1698
    %v1732 = vpack.c.b16 %v1705, %v1702
    %v1733 = vpack.c.b16 %v1706, %v1703
    %v1734 = vpack.c.b16 %v1707, %v1704
    %v1735 = vpack.c.b16 %v1711, %v1708
    %v1736 = vpack.c.b16 %v1712, %v1709
    %v1737 = vpack.c.b16 %v1713, %v1710
    %1762 = vmatprep.subr.bf16.mxu0 %v1715
    %1763 = vmatpush1.bf16.msra.mxu0 %v1714
    %1764 = vmatprep.subr.bf16.mxu0 %v1718
    %1765 = vmatpush1.bf16.msra.mxu0 %v1717
    %1766 = vmatprep.subr.bf16.mxu0 %v1721
    %1767 = vmatpush1.bf16.msra.mxu0 %v1720
    %1768 = vmatprep.subr.bf16.mxu0 %v1724
    %1769 = vmatpush1.bf16.msra.mxu0 %v1723
    %1770 = vmatprep.subr.bf16.mxu0 %v1727
    %1771 = vmatpush1.bf16.msra.mxu0 %v1726
    %1772 = vmatprep.subr.bf16.mxu0 %v1730
    %1773 = vmatpush1.bf16.msra.mxu0 %v1729
    %1774 = vmatprep.subr.bf16.mxu0 %v1733
    %1775 = vmatpush1.bf16.msra.mxu0 %v1732
    %1776 = vmatprep.subr.bf16.mxu0 %v1736
    %1777 = vmatpush1.bf16.msra.mxu0 %v1735
    %1778 = vmatprep.subr.bf16.mxu0 0
    %1779 = vmatpush1.bf16.msra.mxu0 0
    %1780 = vmatprep.subr.bf16.mxu0 0
    %1781 = vmatpush1.bf16.msra.mxu0 0
    %1782 = vmatprep.subr.bf16.mxu0 0
    %1783 = vmatpush1.bf16.msra.mxu0 0
    %1784 = vmatprep.subr.bf16.mxu0 0
    %1785 = vmatpush1.bf16.msra.mxu0 0
    %1786 = vmatprep.subr.bf16.mxu0 0
    %1787 = vmatpush1.bf16.msra.mxu0 0
    %1788 = vmatprep.subr.bf16.mxu0 0
    %1789 = vmatpush1.bf16.msra.mxu0 0
    %1790 = vmatprep.subr.bf16.mxu0 0
    %1791 = vmatpush1.bf16.msra.mxu0 0
    %1792 = vmatprep.subr.bf16.mxu0 0
    %1793 = vmatpush1.bf16.msra.mxu0 0
    %1794 = vmatprep.mubr.bf16.mxu0 0
    %1795 = vmatmul.mubr.bf16.gmra.mrb[0].mxu0 %v1601
    %v1796 = vpop.f32.mrb[0].mxu0
    %v1797 = vadd.f32 0.0, %v1796
    %v1798 = vpop.f32.mrb[0].mxu0
    %v1799 = vadd.f32 0.0, %v1798
    %v1800 = vpop.f32.mrb[0].mxu0
    %v1801 = vpop.f32.mrb[0].mxu0
    %1802 = vdwg.mxu0
    %1803 = vmatprep.subr.bf16.mxu0 0
    %1804 = vmatpush1.bf16.msra.mxu0 %v1716
    %1805 = vmatprep.subr.bf16.mxu0 0
    %1806 = vmatpush1.bf16.msra.mxu0 %v1719
    %1807 = vmatprep.subr.bf16.mxu0 0
    %1808 = vmatpush1.bf16.msra.mxu0 %v1722
    %1809 = vmatprep.subr.bf16.mxu0 0
    %1810 = vmatpush1.bf16.msra.mxu0 %v1725
    %1811 = vmatprep.subr.bf16.mxu0 0
    %1812 = vmatpush1.bf16.msra.mxu0 %v1728
    %1813 = vmatprep.subr.bf16.mxu0 0
    %1814 = vmatpush1.bf16.msra.mxu0 %v1731
    %1815 = vmatprep.subr.bf16.mxu0 0
    %1816 = vmatpush1.bf16.msra.mxu0 %v1734
    %1817 = vmatprep.subr.bf16.mxu0 0
    %1818 = vmatpush1.bf16.msra.mxu0 %v1737
    %1819 = vmatprep.subr.bf16.mxu0 0
    %1820 = vmatpush1.bf16.msra.mxu0 0
    %1821 = vmatprep.subr.bf16.mxu0 0
    %1822 = vmatpush1.bf16.msra.mxu0 0
    %1823 = vmatprep.subr.bf16.mxu0 0
    %1824 = vmatpush1.bf16.msra.mxu0 0
    %1825 = vmatprep.subr.bf16.mxu0 0
    %1826 = vmatpush1.bf16.msra.mxu0 0
    %1827 = vmatprep.subr.bf16.mxu0 0
    %1828 = vmatpush1.bf16.msra.mxu0 0
    %1829 = vmatprep.subr.bf16.mxu0 0
    %1830 = vmatpush1.bf16.msra.mxu0 0
    %1831 = vmatprep.subr.bf16.mxu0 0
    %1832 = vmatpush1.bf16.msra.mxu0 0
    %1833 = vmatprep.subr.bf16.mxu0 0
    %1834 = vmatpush1.bf16.msra.mxu0 0
    %1835 = vmatprep.mubr.bf16.mxu0 0
    %1836 = vmatmul.mubr.bf16.gmra.mrb[0].mxu0 %v1601
    %v1837 = vpop.f32.mrb[0].mxu0
    %v1838 = vadd.f32 0.0, %v1837
    %v1839 = vpop.f32.mrb[0].mxu0
    %v1840 = vpop.f32.mrb[0].mxu0
    %v1841 = vpop.f32.mrb[0].mxu0
    %1842 = vdwg.mxu0
    %v1843 = vadd.f32 %v1600, %v1797
    %v1844 = vxor.u32 %v1843, 2147483648
    %v1845 = vmul.f32 %v1844, 1.442695
    %v1846 = vpow.pop %v1845
    %v1847 = vadd.f32 %v1846, 1.0
    %v1848 = vrcp.pop %v1847
    %v1849 = vmul.f32 1.0, %v1848
    %v1851 = vrot.slane %v1600, 1
    %v1853 = vadd.f32 %v1851, %v1799
    %v1854 = vxor.u32 %v1853, 2147483648
    %v1855 = vmul.f32 %v1854, 1.442695
    %v1856 = vpow.pop %v1855
    %v1857 = vadd.f32 %v1856, 1.0
    %v1858 = vrcp.pop %v1857
    %v1859 = vmul.f32 1.0, %v1858
    %v1860 = vld [vmem:[%s5] sm:$0x1]
    %v1861 = vadd.f32 %v1838, %v1860
    %v1862 = vmul.f32 %v1849, %v1861
    %v1863 = vrot.slane %v1600, 2
    %v1865 = vadd.f32 %v1863, %v1862
    %v1866 = vtanh.pop %v1865
    %v1867 = vsub.f32 1.0, %v1859
    %v1868 = vmul.f32 %v1867, %v1866
    %v1869 = vmul.f32 %v1859, %v1597
    %v1870 = vadd.f32 %v1868, %v1869
    %1871 = vst [vmem:[#allocation3 + $0x5] sm:$0x1] %v1870
    %s1872 = scalar_lea.vmem [#allocation2], 6
    %v1873 = vld [vmem:[%s1872] ss:$8 sm:$0x7]
    %v1874 = vpack.c.bf16 %v1870, %v1870
    %v1875 = vld [vmem:[#allocation9] sm:$0xff]
    %v1876 = vld [vmem:[#allocation9 + $0x8] sm:$0xf]
    %v1877 = vld [vmem:[#allocation9 + $0xc] sm:$0xff]
    %v1878 = vld [vmem:[#allocation9 + $0x14] sm:$0xf]
    %v1879 = vld [vmem:[#allocation9 + $0x18] sm:$0xff]
    %v1880 = vld [vmem:[#allocation9 + $0x20] sm:$0xf]
    %v1881 = vld [vmem:[#allocation9 + $0x24] sm:$0xff]
    %v1882 = vld [vmem:[#allocation9 + $0x2c] sm:$0xf]
    %v1883 = vld [vmem:[#allocation9 + $0x30] sm:$0xff]
    %v1884 = vld [vmem:[#allocation9 + $0x38] sm:$0xf]
    %v1885 = vld [vmem:[#allocation9 + $0x3c] sm:$0xff]
    %v1886 = vld [vmem:[#allocation9 + $0x44] sm:$0xf]
    %v1887 = vld [vmem:[#allocation9 + $0x48] sm:$0xff]
    %v1888 = vld [vmem:[#allocation9 + $0x50] sm:$0xf]
    %v1889 = vld [vmem:[#allocation9 + $0x54] sm:$0xff]
    %v1890 = vld [vmem:[#allocation9 + $0x5c] sm:$0xf]
    %v1891 = vld [vmem:[#allocation9 + $0x60] sm:$0xff]
    %v1892 = vld [vmem:[#allocation9 + $0x68] sm:$0xf]
    %v1893 = vld [vmem:[#allocation9 + $0x6c] sm:$0xff]
    %v1894 = vld [vmem:[#allocation9 + $0x74] sm:$0xf]
    %v1895 = vld [vmem:[#allocation9 + $0x78] sm:$0xff]
    %v1896 = vld [vmem:[#allocation9 + $0x80] sm:$0xf]
    %v1897 = vld [vmem:[#allocation9 + $0x84] sm:$0xff]
    %v1898 = vld [vmem:[#allocation9 + $0x8c] sm:$0xf]
    %v1899 = vld [vmem:[#allocation9 + $0x90] sm:$0xff]
    %v1900 = vld [vmem:[#allocation9 + $0x98] sm:$0xf]
    %v1901 = vld [vmem:[#allocation9 + $0x9c] sm:$0xff]
    %v1902 = vld [vmem:[#allocation9 + $0xa4] sm:$0xf]
    %v1903 = vld [vmem:[#allocation9 + $0xa8] sm:$0xff]
    %v1904 = vld [vmem:[#allocation9 + $0xb0] sm:$0xf]
    %v1905 = vld [vmem:[#allocation9 + $0xb4] sm:$0xff]
    %v1906 = vld [vmem:[#allocation9 + $0xbc] sm:$0xf]
    %v1939 = vunpack.c.l.b16 %v1875
    %v1940 = vunpack.c.h.b16 %v1875
    %v1941 = vunpack.c.l.b16 %v1876
    %v1942 = vunpack.c.l.b16 %v1877
    %v1943 = vunpack.c.h.b16 %v1877
    %v1944 = vunpack.c.l.b16 %v1878
    %v1945 = vunpack.c.l.b16 %v1879
    %v1946 = vunpack.c.h.b16 %v1879
    %v1947 = vunpack.c.l.b16 %v1880
    %v1948 = vunpack.c.l.b16 %v1881
    %v1949 = vunpack.c.h.b16 %v1881
    %v1950 = vunpack.c.l.b16 %v1882
    %v1951 = vunpack.c.l.b16 %v1883
    %v1952 = vunpack.c.h.b16 %v1883
    %v1953 = vunpack.c.l.b16 %v1884
    %v1954 = vunpack.c.l.b16 %v1885
    %v1955 = vunpack.c.h.b16 %v1885
    %v1956 = vunpack.c.l.b16 %v1886
    %v1957 = vunpack.c.l.b16 %v1887
    %v1958 = vunpack.c.h.b16 %v1887
    %v1959 = vunpack.c.l.b16 %v1888
    %v1960 = vunpack.c.l.b16 %v1889
    %v1961 = vunpack.c.h.b16 %v1889
    %v1962 = vunpack.c.l.b16 %v1890
    %v1963 = vunpack.c.l.b16 %v1891
    %v1964 = vunpack.c.h.b16 %v1891
    %v1965 = vunpack.c.l.b16 %v1892
    %v1966 = vunpack.c.l.b16 %v1893
    %v1967 = vunpack.c.h.b16 %v1893
    %v1968 = vunpack.c.l.b16 %v1894
    %v1969 = vunpack.c.l.b16 %v1895
    %v1970 = vunpack.c.h.b16 %v1895
    %v1971 = vunpack.c.l.b16 %v1896
    %v1972 = vunpack.c.l.b16 %v1897
    %v1973 = vunpack.c.h.b16 %v1897
    %v1974 = vunpack.c.l.b16 %v1898
    %v1975 = vunpack.c.l.b16 %v1899
    %v1976 = vunpack.c.h.b16 %v1899
    %v1977 = vunpack.c.l.b16 %v1900
    %v1978 = vunpack.c.l.b16 %v1901
    %v1979 = vunpack.c.h.b16 %v1901
    %v1980 = vunpack.c.l.b16 %v1902
    %v1981 = vunpack.c.l.b16 %v1903
    %v1982 = vunpack.c.h.b16 %v1903
    %v1983 = vunpack.c.l.b16 %v1904
    %v1984 = vunpack.c.l.b16 %v1905
    %v1985 = vunpack.c.h.b16 %v1905
    %v1986 = vunpack.c.l.b16 %v1906
    %v1987 = vpack.c.b16 %v1942, %v1939
    %v1988 = vpack.c.b16 %v1943, %v1940
    %v1989 = vpack.c.b16 %v1944, %v1941
    %v1990 = vpack.c.b16 %v1948, %v1945
    %v1991 = vpack.c.b16 %v1949, %v1946
    %v1992 = vpack.c.b16 %v1950, %v1947
    %v1993 = vpack.c.b16 %v1954, %v1951
    %v1994 = vpack.c.b16 %v1955, %v1952
    %v1995 = vpack.c.b16 %v1956, %v1953
    %v1996 = vpack.c.b16 %v1960, %v1957
    %v1997 = vpack.c.b16 %v1961, %v1958
    %v1998 = vpack.c.b16 %v1962, %v1959
    %v1999 = vpack.c.b16 %v1966, %v1963
    %v2000 = vpack.c.b16 %v1967, %v1964
    %v2001 = vpack.c.b16 %v1968, %v1965
    %v2002 = vpack.c.b16 %v1972, %v1969
    %v2003 = vpack.c.b16 %v1973, %v1970
    %v2004 = vpack.c.b16 %v1974, %v1971
    %v2005 = vpack.c.b16 %v1978, %v1975
    %v2006 = vpack.c.b16 %v1979, %v1976
    %v2007 = vpack.c.b16 %v1980, %v1977
    %v2008 = vpack.c.b16 %v1984, %v1981
    %v2009 = vpack.c.b16 %v1985, %v1982
    %v2010 = vpack.c.b16 %v1986, %v1983
    %2035 = vmatprep.subr.bf16.mxu0 %v1988
    %2036 = vmatpush1.bf16.msra.mxu0 %v1987
    %2037 = vmatprep.subr.bf16.mxu0 %v1991
    %2038 = vmatpush1.bf16.msra.mxu0 %v1990
    %2039 = vmatprep.subr.bf16.mxu0 %v1994
    %2040 = vmatpush1.bf16.msra.mxu0 %v1993
    %2041 = vmatprep.subr.bf16.mxu0 %v1997
    %2042 = vmatpush1.bf16.msra.mxu0 %v1996
    %2043 = vmatprep.subr.bf16.mxu0 %v2000
    %2044 = vmatpush1.bf16.msra.mxu0 %v1999
    %2045 = vmatprep.subr.bf16.mxu0 %v2003
    %2046 = vmatpush1.bf16.msra.mxu0 %v2002
    %2047 = vmatprep.subr.bf16.mxu0 %v2006
    %2048 = vmatpush1.bf16.msra.mxu0 %v2005
    %2049 = vmatprep.subr.bf16.mxu0 %v2009
    %2050 = vmatpush1.bf16.msra.mxu0 %v2008
    %2051 = vmatprep.subr.bf16.mxu0 0
    %2052 = vmatpush1.bf16.msra.mxu0 0
    %2053 = vmatprep.subr.bf16.mxu0 0
    %2054 = vmatpush1.bf16.msra.mxu0 0
    %2055 = vmatprep.subr.bf16.mxu0 0
    %2056 = vmatpush1.bf16.msra.mxu0 0
    %2057 = vmatprep.subr.bf16.mxu0 0
    %2058 = vmatpush1.bf16.msra.mxu0 0
    %2059 = vmatprep.subr.bf16.mxu0 0
    %2060 = vmatpush1.bf16.msra.mxu0 0
    %2061 = vmatprep.subr.bf16.mxu0 0
    %2062 = vmatpush1.bf16.msra.mxu0 0
    %2063 = vmatprep.subr.bf16.mxu0 0
    %2064 = vmatpush1.bf16.msra.mxu0 0
    %2065 = vmatprep.subr.bf16.mxu0 0
    %2066 = vmatpush1.bf16.msra.mxu0 0
    %2067 = vmatprep.mubr.bf16.mxu0 0
    %2068 = vmatmul.mubr.bf16.gmra.mrb[0].mxu0 %v1874
    %v2069 = vpop.f32.mrb[0].mxu0
    %v2070 = vadd.f32 0.0, %v2069
    %v2071 = vpop.f32.mrb[0].mxu0
    %v2072 = vadd.f32 0.0, %v2071
    %v2073 = vpop.f32.mrb[0].mxu0
    %v2074 = vpop.f32.mrb[0].mxu0
    %2075 = vdwg.mxu0
    %2076 = vmatprep.subr.bf16.mxu0 0
    %2077 = vmatpush1.bf16.msra.mxu0 %v1989
    %2078 = vmatprep.subr.bf16.mxu0 0
    %2079 = vmatpush1.bf16.msra.mxu0 %v1992
    %2080 = vmatprep.subr.bf16.mxu0 0
    %2081 = vmatpush1.bf16.msra.mxu0 %v1995
    %2082 = vmatprep.subr.bf16.mxu0 0
    %2083 = vmatpush1.bf16.msra.mxu0 %v1998
    %2084 = vmatprep.subr.bf16.mxu0 0
    %2085 = vmatpush1.bf16.msra.mxu0 %v2001
    %2086 = vmatprep.subr.bf16.mxu0 0
    %2087 = vmatpush1.bf16.msra.mxu0 %v2004
    %2088 = vmatprep.subr.bf16.mxu0 0
    %2089 = vmatpush1.bf16.msra.mxu0 %v2007
    %2090 = vmatprep.subr.bf16.mxu0 0
    %2091 = vmatpush1.bf16.msra.mxu0 %v2010
    %2092 = vmatprep.subr.bf16.mxu0 0
    %2093 = vmatpush1.bf16.msra.mxu0 0
    %2094 = vmatprep.subr.bf16.mxu0 0
    %2095 = vmatpush1.bf16.msra.mxu0 0
    %2096 = vmatprep.subr.bf16.mxu0 0
    %2097 = vmatpush1.bf16.msra.mxu0 0
    %2098 = vmatprep.subr.bf16.mxu0 0
    %2099 = vmatpush1.bf16.msra.mxu0 0
    %2100 = vmatprep.subr.bf16.mxu0 0
    %2101 = vmatpush1.bf16.msra.mxu0 0
    %2102 = vmatprep.subr.bf16.mxu0 0
    %2103 = vmatpush1.bf16.msra.mxu0 0
    %2104 = vmatprep.subr.bf16.mxu0 0
    %2105 = vmatpush1.bf16.msra.mxu0 0
    %2106 = vmatprep.subr.bf16.mxu0 0
    %2107 = vmatpush1.bf16.msra.mxu0 0
    %2108 = vmatprep.mubr.bf16.mxu0 0
    %2109 = vmatmul.mubr.bf16.gmra.mrb[0].mxu0 %v1874
    %v2110 = vpop.f32.mrb[0].mxu0
    %v2111 = vadd.f32 0.0, %v2110
    %v2112 = vpop.f32.mrb[0].mxu0
    %v2113 = vpop.f32.mrb[0].mxu0
    %v2114 = vpop.f32.mrb[0].mxu0
    %2115 = vdwg.mxu0
    %v2116 = vadd.f32 %v1873, %v2070
    %v2117 = vxor.u32 %v2116, 2147483648
    %v2118 = vmul.f32 %v2117, 1.442695
    %v2119 = vpow.pop %v2118
    %v2120 = vadd.f32 %v2119, 1.0
    %v2121 = vrcp.pop %v2120
    %v2122 = vmul.f32 1.0, %v2121
    %v2124 = vrot.slane %v1873, 1
    %v2126 = vadd.f32 %v2124, %v2072
    %v2127 = vxor.u32 %v2126, 2147483648
    %v2128 = vmul.f32 %v2127, 1.442695
    %v2129 = vpow.pop %v2128
    %v2130 = vadd.f32 %v2129, 1.0
    %v2131 = vrcp.pop %v2130
    %v2132 = vmul.f32 1.0, %v2131
    %v2133 = vld [vmem:[%s5] sm:$0x1]
    %v2134 = vadd.f32 %v2111, %v2133
    %v2135 = vmul.f32 %v2122, %v2134
    %v2136 = vrot.slane %v1873, 2
    %v2138 = vadd.f32 %v2136, %v2135
    %v2139 = vtanh.pop %v2138
    %v2140 = vsub.f32 1.0, %v2132
    %v2141 = vmul.f32 %v2140, %v2139
    %v2142 = vmul.f32 %v2132, %v1870
    %v2143 = vadd.f32 %v2141, %v2142
    %2144 = vst [vmem:[#allocation3 + $0x6] sm:$0x1] %v2143
    %s2145 = scalar_lea.vmem [#allocation2], 7
    %v2146 = vld [vmem:[%s2145] ss:$8 sm:$0x7]
    %v2147 = vpack.c.bf16 %v2143, %v2143
    %v2148 = vld [vmem:[#allocation9] sm:$0xff]
    %v2149 = vld [vmem:[#allocation9 + $0x8] sm:$0xf]
    %v2150 = vld [vmem:[#allocation9 + $0xc] sm:$0xff]
    %v2151 = vld [vmem:[#allocation9 + $0x14] sm:$0xf]
    %v2152 = vld [vmem:[#allocation9 + $0x18] sm:$0xff]
    %v2153 = vld [vmem:[#allocation9 + $0x20] sm:$0xf]
    %v2154 = vld [vmem:[#allocation9 + $0x24] sm:$0xff]
    %v2155 = vld [vmem:[#allocation9 + $0x2c] sm:$0xf]
    %v2156 = vld [vmem:[#allocation9 + $0x30] sm:$0xff]
    %v2157 = vld [vmem:[#allocation9 + $0x38] sm:$0xf]
    %v2158 = vld [vmem:[#allocation9 + $0x3c] sm:$0xff]
    %v2159 = vld [vmem:[#allocation9 + $0x44] sm:$0xf]
    %v2160 = vld [vmem:[#allocation9 + $0x48] sm:$0xff]
    %v2161 = vld [vmem:[#allocation9 + $0x50] sm:$0xf]
    %v2162 = vld [vmem:[#allocation9 + $0x54] sm:$0xff]
    %v2163 = vld [vmem:[#allocation9 + $0x5c] sm:$0xf]
    %v2164 = vld [vmem:[#allocation9 + $0x60] sm:$0xff]
    %v2165 = vld [vmem:[#allocation9 + $0x68] sm:$0xf]
    %v2166 = vld [vmem:[#allocation9 + $0x6c] sm:$0xff]
    %v2167 = vld [vmem:[#allocation9 + $0x74] sm:$0xf]
    %v2168 = vld [vmem:[#allocation9 + $0x78] sm:$0xff]
    %v2169 = vld [vmem:[#allocation9 + $0x80] sm:$0xf]
    %v2170 = vld [vmem:[#allocation9 + $0x84] sm:$0xff]
    %v2171 = vld [vmem:[#allocation9 + $0x8c] sm:$0xf]
    %v2172 = vld [vmem:[#allocation9 + $0x90] sm:$0xff]
    %v2173 = vld [vmem:[#allocation9 + $0x98] sm:$0xf]
    %v2174 = vld [vmem:[#allocation9 + $0x9c] sm:$0xff]
    %v2175 = vld [vmem:[#allocation9 + $0xa4] sm:$0xf]
    %v2176 = vld [vmem:[#allocation9 + $0xa8] sm:$0xff]
    %v2177 = vld [vmem:[#allocation9 + $0xb0] sm:$0xf]
    %v2178 = vld [vmem:[#allocation9 + $0xb4] sm:$0xff]
    %v2179 = vld [vmem:[#allocation9 + $0xbc] sm:$0xf]
    %v2212 = vunpack.c.l.b16 %v2148
    %v2213 = vunpack.c.h.b16 %v2148
    %v2214 = vunpack.c.l.b16 %v2149
    %v2215 = vunpack.c.l.b16 %v2150
    %v2216 = vunpack.c.h.b16 %v2150
    %v2217 = vunpack.c.l.b16 %v2151
    %v2218 = vunpack.c.l.b16 %v2152
    %v2219 = vunpack.c.h.b16 %v2152
    %v2220 = vunpack.c.l.b16 %v2153
    %v2221 = vunpack.c.l.b16 %v2154
    %v2222 = vunpack.c.h.b16 %v2154
    %v2223 = vunpack.c.l.b16 %v2155
    %v2224 = vunpack.c.l.b16 %v2156
    %v2225 = vunpack.c.h.b16 %v2156
    %v2226 = vunpack.c.l.b16 %v2157
    %v2227 = vunpack.c.l.b16 %v2158
    %v2228 = vunpack.c.h.b16 %v2158
    %v2229 = vunpack.c.l.b16 %v2159
    %v2230 = vunpack.c.l.b16 %v2160
    %v2231 = vunpack.c.h.b16 %v2160
    %v2232 = vunpack.c.l.b16 %v2161
    %v2233 = vunpack.c.l.b16 %v2162
    %v2234 = vunpack.c.h.b16 %v2162
    %v2235 = vunpack.c.l.b16 %v2163
    %v2236 = vunpack.c.l.b16 %v2164
    %v2237 = vunpack.c.h.b16 %v2164
    %v2238 = vunpack.c.l.b16 %v2165
    %v2239 = vunpack.c.l.b16 %v2166
    %v2240 = vunpack.c.h.b16 %v2166
    %v2241 = vunpack.c.l.b16 %v2167
    %v2242 = vunpack.c.l.b16 %v2168
    %v2243 = vunpack.c.h.b16 %v2168
    %v2244 = vunpack.c.l.b16 %v2169
    %v2245 = vunpack.c.l.b16 %v2170
    %v2246 = vunpack.c.h.b16 %v2170
    %v2247 = vunpack.c.l.b16 %v2171
    %v2248 = vunpack.c.l.b16 %v2172
    %v2249 = vunpack.c.h.b16 %v2172
    %v2250 = vunpack.c.l.b16 %v2173
    %v2251 = vunpack.c.l.b16 %v2174
    %v2252 = vunpack.c.h.b16 %v2174
    %v2253 = vunpack.c.l.b16 %v2175
    %v2254 = vunpack.c.l.b16 %v2176
    %v2255 = vunpack.c.h.b16 %v2176
    %v2256 = vunpack.c.l.b16 %v2177
    %v2257 = vunpack.c.l.b16 %v2178
    %v2258 = vunpack.c.h.b16 %v2178
    %v2259 = vunpack.c.l.b16 %v2179
    %v2260 = vpack.c.b16 %v2215, %v2212
    %v2261 = vpack.c.b16 %v2216, %v2213
    %v2262 = vpack.c.b16 %v2217, %v2214
    %v2263 = vpack.c.b16 %v2221, %v2218
    %v2264 = vpack.c.b16 %v2222, %v2219
    %v2265 = vpack.c.b16 %v2223, %v2220
    %v2266 = vpack.c.b16 %v2227, %v2224
    %v2267 = vpack.c.b16 %v2228, %v2225
    %v2268 = vpack.c.b16 %v2229, %v2226
    %v2269 = vpack.c.b16 %v2233, %v2230
    %v2270 = vpack.c.b16 %v2234, %v2231
    %v2271 = vpack.c.b16 %v2235, %v2232
    %v2272 = vpack.c.b16 %v2239, %v2236
    %v2273 = vpack.c.b16 %v2240, %v2237
    %v2274 = vpack.c.b16 %v2241, %v2238
    %v2275 = vpack.c.b16 %v2245, %v2242
    %v2276 = vpack.c.b16 %v2246, %v2243
    %v2277 = vpack.c.b16 %v2247, %v2244
    %v2278 = vpack.c.b16 %v2251, %v2248
    %v2279 = vpack.c.b16 %v2252, %v2249
    %v2280 = vpack.c.b16 %v2253, %v2250
    %v2281 = vpack.c.b16 %v2257, %v2254
    %v2282 = vpack.c.b16 %v2258, %v2255
    %v2283 = vpack.c.b16 %v2259, %v2256
    %2308 = vmatprep.subr.bf16.mxu0 %v2261
    %2309 = vmatpush1.bf16.msra.mxu0 %v2260
    %2310 = vmatprep.subr.bf16.mxu0 %v2264
    %2311 = vmatpush1.bf16.msra.mxu0 %v2263
    %2312 = vmatprep.subr.bf16.mxu0 %v2267
    %2313 = vmatpush1.bf16.msra.mxu0 %v2266
    %2314 = vmatprep.subr.bf16.mxu0 %v2270
    %2315 = vmatpush1.bf16.msra.mxu0 %v2269
    %2316 = vmatprep.subr.bf16.mxu0 %v2273
    %2317 = vmatpush1.bf16.msra.mxu0 %v2272
    %2318 = vmatprep.subr.bf16.mxu0 %v2276
    %2319 = vmatpush1.bf16.msra.mxu0 %v2275
    %2320 = vmatprep.subr.bf16.mxu0 %v2279
    %2321 = vmatpush1.bf16.msra.mxu0 %v2278
    %2322 = vmatprep.subr.bf16.mxu0 %v2282
    %2323 = vmatpush1.bf16.msra.mxu0 %v2281
    %2324 = vmatprep.subr.bf16.mxu0 0
    %2325 = vmatpush1.bf16.msra.mxu0 0
    %2326 = vmatprep.subr.bf16.mxu0 0
    %2327 = vmatpush1.bf16.msra.mxu0 0
    %2328 = vmatprep.subr.bf16.mxu0 0
    %2329 = vmatpush1.bf16.msra.mxu0 0
    %2330 = vmatprep.subr.bf16.mxu0 0
    %2331 = vmatpush1.bf16.msra.mxu0 0
    %2332 = vmatprep.subr.bf16.mxu0 0
    %2333 = vmatpush1.bf16.msra.mxu0 0
    %2334 = vmatprep.subr.bf16.mxu0 0
    %2335 = vmatpush1.bf16.msra.mxu0 0
    %2336 = vmatprep.subr.bf16.mxu0 0
    %2337 = vmatpush1.bf16.msra.mxu0 0
    %2338 = vmatprep.subr.bf16.mxu0 0
    %2339 = vmatpush1.bf16.msra.mxu0 0
    %2340 = vmatprep.mubr.bf16.mxu0 0
    %2341 = vmatmul.mubr.bf16.gmra.mrb[0].mxu0 %v2147
    %v2342 = vpop.f32.mrb[0].mxu0
    %v2343 = vadd.f32 0.0, %v2342
    %v2344 = vpop.f32.mrb[0].mxu0
    %v2345 = vadd.f32 0.0, %v2344
    %v2346 = vpop.f32.mrb[0].mxu0
    %v2347 = vpop.f32.mrb[0].mxu0
    %2348 = vdwg.mxu0
    %2349 = vmatprep.subr.bf16.mxu0 0
    %2350 = vmatpush1.bf16.msra.mxu0 %v2262
    %2351 = vmatprep.subr.bf16.mxu0 0
    %2352 = vmatpush1.bf16.msra.mxu0 %v2265
    %2353 = vmatprep.subr.bf16.mxu0 0
    %2354 = vmatpush1.bf16.msra.mxu0 %v2268
    %2355 = vmatprep.subr.bf16.mxu0 0
    %2356 = vmatpush1.bf16.msra.mxu0 %v2271
    %2357 = vmatprep.subr.bf16.mxu0 0
    %2358 = vmatpush1.bf16.msra.mxu0 %v2274
    %2359 = vmatprep.subr.bf16.mxu0 0
    %2360 = vmatpush1.bf16.msra.mxu0 %v2277
    %2361 = vmatprep.subr.bf16.mxu0 0
    %2362 = vmatpush1.bf16.msra.mxu0 %v2280
    %2363 = vmatprep.subr.bf16.mxu0 0
    %2364 = vmatpush1.bf16.msra.mxu0 %v2283
    %2365 = vmatprep.subr.bf16.mxu0 0
    %2366 = vmatpush1.bf16.msra.mxu0 0
    %2367 = vmatprep.subr.bf16.mxu0 0
    %2368 = vmatpush1.bf16.msra.mxu0 0
    %2369 = vmatprep.subr.bf16.mxu0 0
    %2370 = vmatpush1.bf16.msra.mxu0 0
    %2371 = vmatprep.subr.bf16.mxu0 0
    %2372 = vmatpush1.bf16.msra.mxu0 0
    %2373 = vmatprep.subr.bf16.mxu0 0
    %2374 = vmatpush1.bf16.msra.mxu0 0
    %2375 = vmatprep.subr.bf16.mxu0 0
    %2376 = vmatpush1.bf16.msra.mxu0 0
    %2377 = vmatprep.subr.bf16.mxu0 0
    %2378 = vmatpush1.bf16.msra.mxu0 0
    %2379 = vmatprep.subr.bf16.mxu0 0
    %2380 = vmatpush1.bf16.msra.mxu0 0
    %2381 = vmatprep.mubr.bf16.mxu0 0
    %2382 = vmatmul.mubr.bf16.gmra.mrb[0].mxu0 %v2147
    %v2383 = vpop.f32.mrb[0].mxu0
    %v2384 = vadd.f32 0.0, %v2383
    %v2385 = vpop.f32.mrb[0].mxu0
    %v2386 = vpop.f32.mrb[0].mxu0
    %v2387 = vpop.f32.mrb[0].mxu0
    %2388 = vdwg.mxu0
    %v2389 = vadd.f32 %v2146, %v2343
    %v2390 = vxor.u32 %v2389, 2147483648
    %v2391 = vmul.f32 %v2390, 1.442695
    %v2392 = vpow.pop %v2391
    %v2393 = vadd.f32 %v2392, 1.0
    %v2394 = vrcp.pop %v2393
    %v2395 = vmul.f32 1.0, %v2394
    %v2397 = vrot.slane %v2146, 1
    %v2399 = vadd.f32 %v2397, %v2345
    %v2400 = vxor.u32 %v2399, 2147483648
    %v2401 = vmul.f32 %v2400, 1.442695
    %v2402 = vpow.pop %v2401
    %v2403 = vadd.f32 %v2402, 1.0
    %v2404 = vrcp.pop %v2403
    %v2405 = vmul.f32 1.0, %v2404
    %v2406 = vld [vmem:[%s5] sm:$0x1]
    %v2407 = vadd.f32 %v2384, %v2406
    %v2408 = vmul.f32 %v2395, %v2407
    %v2409 = vrot.slane %v2146, 2
    %v2411 = vadd.f32 %v2409, %v2408
    %v2412 = vtanh.pop %v2411
    %v2413 = vsub.f32 1.0, %v2405
    %v2414 = vmul.f32 %v2413, %v2412
    %v2415 = vmul.f32 %v2405, %v2143
    %v2416 = vadd.f32 %v2414, %v2415
    %2417 = vst [vmem:[#allocation3 + $0x7] sm:$0x1] %v2416
    %v2418 = vld [vmem:[#allocation3] sm:$0xff]
    %v2419 = vmax.f32 %v2418, 0.0
    %v2420 = vpack.c.bf16 %v2419, %v2419
    %v2421 = vld [vmem:[#allocation10] sm:$0xf]
    %v2422 = vld [vmem:[#allocation10 + $0x4] sm:$0xf]
    %v2423 = vld [vmem:[#allocation10 + $0x8] sm:$0xf]
    %v2424 = vld [vmem:[#allocation10 + $0xc] sm:$0xf]
    %v2425 = vld [vmem:[#allocation10 + $0x10] sm:$0xf]
    %v2426 = vld [vmem:[#allocation10 + $0x14] sm:$0xf]
    %v2427 = vld [vmem:[#allocation10 + $0x18] sm:$0xf]
    %v2428 = vld [vmem:[#allocation10 + $0x1c] sm:$0xf]
    %v2429 = vld [vmem:[#allocation10 + $0x20] sm:$0xf]
    %v2430 = vld [vmem:[#allocation10 + $0x24] sm:$0xf]
    %v2431 = vld [vmem:[#allocation10 + $0x28] sm:$0xf]
    %v2432 = vld [vmem:[#allocation10 + $0x2c] sm:$0xf]
    %v2433 = vld [vmem:[#allocation10 + $0x30] sm:$0xf]
    %v2434 = vld [vmem:[#allocation10 + $0x34] sm:$0xf]
    %v2435 = vld [vmem:[#allocation10 + $0x38] sm:$0xf]
    %v2436 = vld [vmem:[#allocation10 + $0x3c] sm:$0xf]
    %v2437 = vld [vmem:[%s7] sm:$0x1]
    %v2439 = vlaneseq
    %v2440 = vshrl.u32 %v2439, 7
    %v2441 = vsub.s32 0, %v2440
    %v2442 = vrot.slane %v2437, %v2441
    %v2460 = vunpack.c.l.b16 %v2421
    %v2461 = vunpack.c.l.b16 %v2422
    %v2462 = vunpack.c.l.b16 %v2423
    %v2463 = vunpack.c.l.b16 %v2424
    %v2464 = vunpack.c.l.b16 %v2425
    %v2465 = vunpack.c.l.b16 %v2426
    %v2466 = vunpack.c.l.b16 %v2427
    %v2467 = vunpack.c.l.b16 %v2428
    %v2468 = vunpack.c.l.b16 %v2429
    %v2469 = vunpack.c.l.b16 %v2430
    %v2470 = vunpack.c.l.b16 %v2431
    %v2471 = vunpack.c.l.b16 %v2432
    %v2472 = vunpack.c.l.b16 %v2433
    %v2473 = vunpack.c.l.b16 %v2434
    %v2474 = vunpack.c.l.b16 %v2435
    %v2475 = vunpack.c.l.b16 %v2436
    %v2476 = vpack.c.b16 %v2461, %v2460
    %v2477 = vpack.c.b16 %v2463, %v2462
    %v2478 = vpack.c.b16 %v2465, %v2464
    %v2479 = vpack.c.b16 %v2467, %v2466
    %v2480 = vpack.c.b16 %v2469, %v2468
    %v2481 = vpack.c.b16 %v2471, %v2470
    %v2482 = vpack.c.b16 %v2473, %v2472
    %v2483 = vpack.c.b16 %v2475, %v2474
    %2492 = vmatprep.subr.bf16.mxu0 0
    %2493 = vmatpush1.bf16.msra.mxu0 %v2476
    %2494 = vmatprep.subr.bf16.mxu0 0
    %2495 = vmatpush1.bf16.msra.mxu0 %v2477
    %2496 = vmatprep.subr.bf16.mxu0 0
    %2497 = vmatpush1.bf16.msra.mxu0 %v2478
    %2498 = vmatprep.subr.bf16.mxu0 0
    %2499 = vmatpush1.bf16.msra.mxu0 %v2479
    %2500 = vmatprep.subr.bf16.mxu0 0
    %2501 = vmatpush1.bf16.msra.mxu0 %v2480
    %2502 = vmatprep.subr.bf16.mxu0 0
    %2503 = vmatpush1.bf16.msra.mxu0 %v2481
    %2504 = vmatprep.subr.bf16.mxu0 0
    %2505 = vmatpush1.bf16.msra.mxu0 %v2482
    %2506 = vmatprep.subr.bf16.mxu0 0
    %2507 = vmatpush1.bf16.msra.mxu0 %v2483
    %2508 = vmatprep.subr.bf16.mxu0 0
    %2509 = vmatpush1.bf16.msra.mxu0 0
    %2510 = vmatprep.subr.bf16.mxu0 0
    %2511 = vmatpush1.bf16.msra.mxu0 0
    %2512 = vmatprep.subr.bf16.mxu0 0
    %2513 = vmatpush1.bf16.msra.mxu0 0
    %2514 = vmatprep.subr.bf16.mxu0 0
    %2515 = vmatpush1.bf16.msra.mxu0 0
    %2516 = vmatprep.subr.bf16.mxu0 0
    %2517 = vmatpush1.bf16.msra.mxu0 0
    %2518 = vmatprep.subr.bf16.mxu0 0
    %2519 = vmatpush1.bf16.msra.mxu0 0
    %2520 = vmatprep.subr.bf16.mxu0 0
    %2521 = vmatpush1.bf16.msra.mxu0 0
    %2522 = vmatprep.subr.bf16.mxu0 0
    %2523 = vmatpush1.bf16.msra.mxu0 0
    %2524 = vmatprep.mubr.bf16.mxu0 0
    %2525 = vmatmul.mubr.bf16.gmra.mrb[0].mxu0 %v2420
    %v2526 = vpop.f32.mrb[0].mxu0
    %v2527 = vadd.f32 %v2442, %v2526
    %v2528 = vpop.f32.mrb[0].mxu0
    %v2529 = vpop.f32.mrb[0].mxu0
    %v2530 = vpop.f32.mrb[0].mxu0
    %2531 = vdwg.mxu0
    %2532 = vst [vmem:[#allocation12] sm:$0xff] %v2527
    %2533 = vst [vmem:[#allocation13] sm:$0x1] %v2416
    // Predicated region
    $region50: #{tpu_custom_call.1} parent=1 // pred_check
      _
    $region51: #{tpu_custom_call.1} parent=1 // pred_check_branch
      %2535 = sbr.rel (0) target = $region53
    $region52: #{tpu_custom_call.1} parent=1 // pred_region
      %s2537 = ssub.s32 128, 128
      %2538 = vsyncadd [#allocation6], %s2537
      %s2540 = sshll.u32 [#allocation12], 4
      %s2541 = int_to_ptr.vmem [resolvable:$true] %s2540
      %2543 = dma.vmem_to_hbm [thread:$0]  %s2541, 128, %s8, [#allocation6]
    $region53: #{tpu_custom_call.1} parent=1 // pred_fallthru
      _
    // Predicated region
    $region54: #{tpu_custom_call.1} parent=1 // pred_check
      _
    $region55: #{tpu_custom_call.1} parent=1 // pred_check_branch
      %2545 = sbr.rel (0) target = $region57
    $region56: #{tpu_custom_call.1} parent=1 // pred_region
      %s2547 = ssub.s32 16, 16
      %2548 = vsyncadd [#allocation14], %s2547
      %s2550 = sshll.u32 [#allocation13], 4
      %s2551 = int_to_ptr.vmem [resolvable:$true] %s2550
      %2553 = dma.vmem_to_hbm [thread:$0]  %s2551, 16, %s9, [#allocation14]
    $region57: #{tpu_custom_call.1} parent=1 // pred_fallthru
      _
    // Predicated region
    $region58: #{tpu_custom_call.1} parent=1 // pred_check
      _
    $region59: #{tpu_custom_call.1} parent=1 // pred_check_branch
      %2555 = sbr.rel (0) target = $region61
    $region60: #{tpu_custom_call.1} parent=1 // pred_region
      %2556 = dma.done [#allocation6], 128
    $region61: #{tpu_custom_call.1} parent=1 // pred_fallthru
      _
    // Predicated region
    $region62: #{tpu_custom_call.1} parent=1 // pred_check
      _
    $region63: #{tpu_custom_call.1} parent=1 // pred_check_branch
      %2558 = sbr.rel (0) target = $region65
    $region64: #{tpu_custom_call.1} parent=1 // pred_region
      %2559 = dma.done [#allocation14], 16
    $region65: #{tpu_custom_call.1} parent=1 // pred_fallthru
      _
    %2560 = vsyncpa [#allocation5], 1
    %2561 = vsyncpa [#allocation8], 1
    %2562 = vsyncpa [#allocation11], 1
    %2563 = vsyncpa [#allocation6], 1
    %2564 = vsyncpa [#allocation14], 1

</llo_original>
